<compile_context>
chip_gen: v6e
topology: v6e:2x2x1
jax: 0.10.0
libtpu: 0.0.40
codegen_flags: <defaults>
</compile_context>

<pallas_src>
import jax
import jax.numpy as jnp
from jax.experimental import pallas as pl
from jax.experimental.pallas import tpu as pltpu


def _discriminator_kernel(x_ref, w1_ref, b1_ref, w2_ref, b2_ref, o_ref):
    # fc1: cast the f32 x tile to bf16 in-register (cheap VPU convert that
    # overlaps the next tile's DMA), bf16 MXU matmul with f32 accumulation.
    x_bf = x_ref[...].astype(jnp.bfloat16)
    h = jnp.dot(x_bf, w1_ref[...], preferred_element_type=jnp.float32)
    h = h + b1_ref[...]                       # (TB, 1024) + (1, 1024)
    h = jnp.maximum(h, 0.2 * h)               # leaky_relu(0.2): single VPU max

    # fc2 (N=1 output): VPU multiply + XLU lane reduction instead of burning
    # the MXU on a 1-lane-wide matmul.
    logits_col = jnp.sum(h * w2_ref[...], axis=-1, keepdims=True)    # (TB, 1)

    # Lane-dense epilogue: one small transpose so the bias add, sigmoid and the
    # store all run on dense (1, TB) vregs (unmasked vst) instead of 1/128-lane
    # masked stores.
    logits = jnp.transpose(logits_col) + b2_ref[0, 0]                # (1, TB)

    # numerically-stable sigmoid: single exp (EUP), never overflows
    z = jnp.exp(-jnp.abs(logits))
    sig = jnp.where(logits >= 0, 1.0 / (1.0 + z), z / (1.0 + z))
    o_ref[...] = sig.reshape(o_ref.shape)                            # (1,1,TB)


def discriminator_forward(x, w1, b1, w2, b2, *, tb=1024):
    """x: (B, 784) f32 -> (B, 1) f32 probabilities.

    w1: (784, 1024), b1: (1, 1024), w2: (1024, 1), b2: (1, 1)
    (torch-transposed weights so the kernel computes y = x @ W + b).
    """
    B, K = x.shape
    N1 = w1.shape[1]

    # Batch tile: multiple of 8 (sublane), no bigger than the (8-rounded)
    # batch, and — when the batch allows it — small enough that the grid has
    # >= 2 tiles so the "parallel" axis can shard across v7x's 2 TensorCores.
    b8 = pl.cdiv(B, 8) * 8
    tb = max(8, (min(tb, b8) // 8) * 8)
    if b8 >= 16 and pl.cdiv(b8, tb) < 2:
        tb = max(8, ((b8 // 2) // 8) * 8)
    num_tiles = pl.cdiv(B, tb)

    # One-time tiny casts/reshapes of the weights (resident in VMEM all run).
    w1_bf = w1.astype(jnp.bfloat16)                  # (784, 1024) bf16 resident
    b1_r = b1.reshape(1, N1).astype(jnp.float32)
    w2_r = w2.reshape(1, N1).astype(jnp.float32)     # (1024,1) -> (1,1024) row
    b2_r = b2.reshape(1, 1).astype(jnp.float32)      # scalar -> SMEM

    out = pl.pallas_call(
        _discriminator_kernel,
        out_shape=jax.ShapeDtypeStruct((num_tiles, 1, tb), jnp.float32),
        grid=(num_tiles,),
        in_specs=[
            pl.BlockSpec((tb, K), lambda i: (i, 0)),      # x: f32, tiled batch
            pl.BlockSpec((K, N1), lambda i: (0, 0)),      # W1 bf16: resident
            pl.BlockSpec((1, N1), lambda i: (0, 0)),      # b1: resident
            pl.BlockSpec((1, N1), lambda i: (0, 0)),      # w2 row: resident
            pl.BlockSpec(memory_space=pltpu.MemorySpace.SMEM),   # b2 scalar
        ],
        out_specs=pl.BlockSpec((1, 1, tb), lambda i: (i, 0, 0)),  # lane-dense
        compiler_params=pltpu.CompilerParams(
            dimension_semantics=("parallel",),
            vmem_limit_bytes=48 * 1024 * 1024),
    )(x, w1_bf, b1_r, w2_r, b2_r)

    # (num_tiles, 1, tb) row-major -> flat batch order; drop padded tail rows.
    return out.reshape(num_tiles * tb)[:B].reshape(B, 1)


def init_params(key):
    """Deterministic init mimicking nn.Linear default (uniform ±1/sqrt(fan_in))."""
    k1, k2, k3, k4 = jax.random.split(key, 4)
    in1, out1 = 28 * 28, 1024
    in2, out2 = 1024, 1
    lim1 = 1.0 / jnp.sqrt(jnp.float32(in1))
    lim2 = 1.0 / jnp.sqrt(jnp.float32(in2))
    w1 = jax.random.uniform(k1, (in1, out1), jnp.float32, -lim1, lim1)
    b1 = jax.random.uniform(k2, (1, out1), jnp.float32, -lim1, lim1)
    w2 = jax.random.uniform(k3, (in2, out2), jnp.float32, -lim2, lim2)
    b2 = jax.random.uniform(k4, (1, out2), jnp.float32, -lim2, lim2)
    return w1, b1, w2, b2


def reference_forward(x, w1, b1, w2, b2):
    # Reference with the same bf16 fc1 precision choice as the kernel
    # (deliberate perf tradeoff); fc2 in full f32.
    h = jnp.dot(x.astype(jnp.bfloat16), w1.astype(jnp.bfloat16),
                preferred_element_type=jnp.float32) + b1
    h = jnp.maximum(h, 0.2 * h)
    logits = jnp.dot(h, w2, precision=jax.lax.Precision.HIGHEST) + b2
    return jax.nn.sigmoid(logits)


if __name__ == "__main__":
    key = jax.random.PRNGKey(0)
    kx, kp = jax.random.split(key)

    B = 8  # small batch
    x = jax.random.normal(kx, (B, 28 * 28), dtype=jnp.float32)
    w1, b1, w2, b2 = init_params(kp)

    out = discriminator_forward(x, w1, b1, w2, b2)
    out = jax.block_until_ready(out)

    ref = reference_forward(x, w1, b1, w2, b2)
    assert out.shape == (B, 1)
    assert jnp.allclose(out, ref, atol=5e-4, rtol=5e-4), (
        f"max abs err {jnp.max(jnp.abs(out - ref))}")

    print("KERNEL_OK")
</pallas_src>

<mosaic_0001>
module attributes {stable_mosaic.version = 11 : i64} {
  func.func @_discriminator_kernel(%arg0: i32, %arg1: memref<8x784xf32, #tpu.memory_space<vmem>>, %arg2: memref<784x1024xbf16, #tpu.memory_space<vmem>>, %arg3: memref<1x1024xf32, #tpu.memory_space<vmem>>, %arg4: memref<1x1024xf32, #tpu.memory_space<vmem>>, %arg5: memref<1x1xf32, #tpu.memory_space<smem>>, %arg6: memref<1x1x8xf32, #tpu.memory_space<vmem>>) attributes {dimension_semantics = [#tpu.dimension_semantics<parallel>], iteration_bounds = array<i64: 1>, scalar_prefetch = 0 : i64, scratch_operands = 0 : i64, tpu.core_type = #tpu.core_type<tc>, window_params = [{transform_indices = @transform_0, window_bounds = array<i64: 8, 784>}, {pipeline_mode = #tpu.pipeline_mode<synchronous>, transform_indices = @transform_1, window_bounds = array<i64: 784, 1024>}, {pipeline_mode = #tpu.pipeline_mode<synchronous>, transform_indices = @transform_2, window_bounds = array<i64: 1, 1024>}, {pipeline_mode = #tpu.pipeline_mode<synchronous>, transform_indices = @transform_3, window_bounds = array<i64: 1, 1024>}, {transform_indices = @transform_4, window_bounds = array<i64: 1, 1>}, {transform_indices = @transform_5, window_bounds = array<i64: 1, 1, 8>}]} {
    %c0 = arith.constant 0 : index
    %c0_0 = arith.constant 0 : index
    %0 = vector.load %arg1[%c0, %c0_0] : memref<8x784xf32, #tpu.memory_space<vmem>>, vector<8x784xf32>
    %1 = arith.truncf %0 : vector<8x784xf32> to vector<8x784xbf16>
    %c0_1 = arith.constant 0 : index
    %c0_2 = arith.constant 0 : index
    %2 = vector.load %arg2[%c0_1, %c0_2] : memref<784x1024xbf16, #tpu.memory_space<vmem>>, vector<784x1024xbf16>
    %cst = arith.constant dense<0.000000e+00> : vector<8x1024xf32>
    %3 = tpu.matmul %1, %2, %cst {dimension_numbers = #tpu.dot_dimension_numbers<[1], [0], [0], [1], [0, 0, 1, 1], [], []>} : vector<8x784xbf16>, vector<784x1024xbf16>, vector<8x1024xf32> -> vector<8x1024xf32>
    %c0_3 = arith.constant 0 : index
    %c0_4 = arith.constant 0 : index
    %4 = vector.load %arg3[%c0_3, %c0_4] : memref<1x1024xf32, #tpu.memory_space<vmem>>, vector<1x1024xf32>
    %5 = vector.broadcast %4 : vector<1x1024xf32> to vector<8x1024xf32>
    %6 = arith.addf %3, %5 : vector<8x1024xf32>
    %cst_5 = arith.constant 2.000000e-01 : f32
    %7 = vector.broadcast %cst_5 : f32 to vector<8x1024xf32>
    %8 = arith.mulf %7, %6 : vector<8x1024xf32>
    %9 = arith.maximumf %6, %8 : vector<8x1024xf32>
    %c0_6 = arith.constant 0 : index
    %c0_7 = arith.constant 0 : index
    %10 = vector.load %arg4[%c0_6, %c0_7] : memref<1x1024xf32, #tpu.memory_space<vmem>>, vector<1x1024xf32>
    %11 = vector.broadcast %10 : vector<1x1024xf32> to vector<8x1024xf32>
    %12 = arith.mulf %9, %11 : vector<8x1024xf32>
    %cst_8 = arith.constant dense<0.000000e+00> : vector<8xf32>
    %13 = vector.multi_reduction <add>, %12, %cst_8 [1] : vector<8x1024xf32> to vector<8xf32>
    %14 = vector.shape_cast %13 : vector<8xf32> to vector<8x1xf32>
    %15 = tpu.transpose %14, [1, 0] : vector<8x1xf32> -> vector<1x8xf32>
    %c0_9 = arith.constant 0 : index
    %c0_10 = arith.constant 0 : index
    %16 = memref.load %arg5[%c0_9, %c0_10] : memref<1x1xf32, #tpu.memory_space<smem>>
    %17 = vector.broadcast %16 : f32 to vector<1x8xf32>
    %18 = arith.addf %15, %17 : vector<1x8xf32>
    %19 = math.absf %18 : vector<1x8xf32>
    %cst_11 = arith.constant 0.000000e+00 : f32
    %20 = vector.broadcast %cst_11 : f32 to vector<1x8xf32>
    %21 = arith.subf %20, %19 : vector<1x8xf32>
    %22 = math.exp %21 : vector<1x8xf32>
    %cst_12 = arith.constant 0.000000e+00 : f32
    %23 = vector.broadcast %cst_12 : f32 to vector<1x8xf32>
    %24 = arith.cmpf oge, %18, %23 : vector<1x8xf32>
    %cst_13 = arith.constant 1.000000e+00 : f32
    %25 = vector.broadcast %cst_13 : f32 to vector<1x8xf32>
    %26 = arith.addf %25, %22 : vector<1x8xf32>
    %cst_14 = arith.constant 1.000000e+00 : f32
    %27 = vector.broadcast %cst_14 : f32 to vector<1x8xf32>
    %28 = arith.divf %27, %26 : vector<1x8xf32>
    %cst_15 = arith.constant 1.000000e+00 : f32
    %29 = vector.broadcast %cst_15 : f32 to vector<1x8xf32>
    %30 = arith.addf %29, %22 : vector<1x8xf32>
    %31 = arith.divf %22, %30 : vector<1x8xf32>
    %32 = arith.select %24, %28, %31 : vector<1x8xi1>, vector<1x8xf32>
    %33 = vector.shape_cast %32 : vector<1x8xf32> to vector<1x1x8xf32>
    %c0_16 = arith.constant 0 : index
    %c0_17 = arith.constant 0 : index
    %c0_18 = arith.constant 0 : index
    %34 = vector.load %arg6[%c0_16, %c0_17, %c0_18] : memref<1x1x8xf32, #tpu.memory_space<vmem>>, vector<1x1x8xf32>
    tpu.vector_store %arg6[%c0_16, %c0_17, %c0_18], %33 {strides = array<i32>} : memref<1x1x8xf32, #tpu.memory_space<vmem>>, vector<1x1x8xf32>,
    return
  }
  func.func @transform_0(%arg0: i32) -> (i32, i32) {
    %c0_i32 = arith.constant 0 : i32
    %c0_i32_0 = arith.constant 0 : i32
    return %arg0, %c0_i32 : i32, i32
  }
  func.func @transform_1(%arg0: i32) -> (i32, i32) {
    %c0_i32 = arith.constant 0 : i32
    %c0_i32_0 = arith.constant 0 : i32
    %c0_i32_1 = arith.constant 0 : i32
    return %c0_i32, %c0_i32_0 : i32, i32
  }
  func.func @transform_2(%arg0: i32) -> (i32, i32) {
    %c0_i32 = arith.constant 0 : i32
    %c0_i32_0 = arith.constant 0 : i32
    %c0_i32_1 = arith.constant 0 : i32
    return %c0_i32, %c0_i32_0 : i32, i32
  }
  func.func @transform_3(%arg0: i32) -> (i32, i32) {
    %c0_i32 = arith.constant 0 : i32
    %c0_i32_0 = arith.constant 0 : i32
    %c0_i32_1 = arith.constant 0 : i32
    return %c0_i32, %c0_i32_0 : i32, i32
  }
  func.func @transform_4(%arg0: i32) -> (i32, i32) {
    %c0_i32 = arith.constant 0 : i32
    %c0_i32_0 = arith.constant 0 : i32
    %c0_i32_1 = arith.constant 0 : i32
    return %c0_i32, %c0_i32_0 : i32, i32
  }
  func.func @transform_5(%arg0: i32) -> (i32, i32, i32) {
    %c0_i32 = arith.constant 0 : i32
    %c0_i32_0 = arith.constant 0 : i32
    %c0_i32_1 = arith.constant 0 : i32
    return %arg0, %c0_i32, %c0_i32_0 : i32, i32, i32
  }
}

</mosaic_0001>

<llo_original>
// kernel: tpu_custom_call.1
$region0: #{tpu_custom_call.1}
  #allocation0 [shape = 'u32[]', space=smem, size = 0x4, offset = 0x4, fixed_abs, tag = 'smem constant byte address 0x4 - core index']
  #allocation1 [shape = 'u32[144,128]{1,0:T(1,128)}', space=vmem, size = 0x12000, scoped, tag = 'internal scratch']
  #allocation2 [shape = 'f32[1,1]{1,0:T(1,128)S(6)}', space=smem, size = 0x200, scoped, tag = 'scoped memory for tpu_custom_call.1']
  %s0 = inlined_call_operand.hbm [shape: f32[8,784], index: 0, kind: input, shape index: {}]
  %s1 = inlined_call_operand.hbm [shape: bf16[784,1024], index: 1, kind: input, shape index: {}]
  %s2 = inlined_call_operand.hbm [shape: f32[1,1024], index: 2, kind: input, shape index: {}]
  %s3 = inlined_call_operand.hbm [shape: f32[1,1024], index: 3, kind: input, shape index: {}]
  %s4 = inlined_call_operand.<no memory space> [shape: f32[1,1], index: 4, kind: input, shape index: {}]
  %s5 = inlined_call_operand.hbm [shape: f32[1,1,8], index: 5, kind: output, shape index: {}]
  %s6 = sld [smem:[#allocation0]]
  $region46: #{tpu_custom_call.1} parent=0
    _
  %s8 = ssub.s32 1, %s6
  %s9 = scalar_select 0, %s8, %s6
  %10 = sst [smem:[#allocation2]] %s4
  $region1: #{tpu_custom_call.1} parent=0
    #allocation3 [shape = 'u8[28672]{0}', space=vmem, size = 0x7000, scoped, tag = 'input window, operand 0, single buffered']
    #allocation4 [shape = 's32[1]{0}', space=sflag, size = 0x4, scoped, tag = 'scoped memory for tpu_custom_call.1']
    #allocation5 [shape = 's32[1]{0}', space=sflag, size = 0x4, scoped, tag = 'scoped memory for tpu_custom_call.1']
    #allocation6 [shape = 'u8[1605632]{0}', space=vmem, size = 0x188000, scoped, tag = 'input window, operand 1, single buffered']
    #allocation7 [shape = 's32[1]{0}', space=sflag, size = 0x4, scoped, tag = 'scoped memory for tpu_custom_call.1']
    #allocation8 [shape = 'u8[4096]{0}', space=vmem, size = 0x1000, scoped, tag = 'input window, operand 2, single buffered']
    #allocation9 [shape = 'u8[4096]{0}', space=vmem, size = 0x1000, scoped, tag = 'input window, operand 3, single buffered']
    #allocation10 [shape = 's32[1]{0}', space=sflag, size = 0x4, scoped, tag = 'scoped memory for tpu_custom_call.1']
    #allocation11 [shape = 'u8[512]{0}', space=vmem, size = 0x400, scoped, tag = 'output window, operand 0, single buffered']
    %11 = vsyncpa [#allocation4], 0
    %12 = vsyncpa [#allocation7], 0
    %13 = vsyncpa [#allocation10], 0
    %14 = vsyncpa [#allocation5], 0
    // Predicated region
    $region2: #{tpu_custom_call.1} parent=1 // pred_check
      _
    $region3: #{tpu_custom_call.1} parent=1 // pred_check_branch
      %16 = sbr.rel (0) target = $region5
    $region4: #{tpu_custom_call.1} parent=1 // pred_region
      %s18 = ssub.s32 896, 896
      %19 = vsyncadd [#allocation4], %s18
      %s21 = sshll.u32 [#allocation3], 4
      %s22 = int_to_ptr.vmem [resolvable:$true] %s21
      %24 = dma.hbm_to_vmem [thread:$0]  %s0, 896, %s22, [#allocation4]
    $region5: #{tpu_custom_call.1} parent=1 // pred_fallthru
      _
    // Predicated region
    $region6: #{tpu_custom_call.1} parent=1 // pred_check
      _
    $region7: #{tpu_custom_call.1} parent=1 // pred_check_branch
      %26 = sbr.rel (0) target = $region9
    $region8: #{tpu_custom_call.1} parent=1 // pred_region
      %s28 = ssub.s32 50176, 50176
      %29 = vsyncadd [#allocation7], %s28
      %s30 = sshll.u32 [#allocation6], 4
      %s31 = int_to_ptr.vmem [resolvable:$true] %s30
      %36 = dma.hbm_to_vmem [thread:$0]  %s1, 50176, %s31, [#allocation7], 512, 512, 32
    $region9: #{tpu_custom_call.1} parent=1 // pred_fallthru
      _
    // Predicated region
    $region10: #{tpu_custom_call.1} parent=1 // pred_check
      _
    $region11: #{tpu_custom_call.1} parent=1 // pred_check_branch
      %38 = sbr.rel (0) target = $region13
    $region12: #{tpu_custom_call.1} parent=1 // pred_region
      %s40 = ssub.s32 128, 128
      %41 = vsyncadd [#allocation7], %s40
      %s43 = sshll.u32 [#allocation8], 4
      %s44 = int_to_ptr.vmem [resolvable:$true] %s43
      %46 = dma.hbm_to_vmem [thread:$0]  %s2, 128, %s44, [#allocation7]
    $region13: #{tpu_custom_call.1} parent=1 // pred_fallthru
      _
    // Predicated region
    $region14: #{tpu_custom_call.1} parent=1 // pred_check
      _
    $region15: #{tpu_custom_call.1} parent=1 // pred_check_branch
      %48 = sbr.rel (0) target = $region17
    $region16: #{tpu_custom_call.1} parent=1 // pred_region
      %s50 = ssub.s32 128, 128
      %51 = vsyncadd [#allocation10], %s50
      %s53 = sshll.u32 [#allocation9], 4
      %s54 = int_to_ptr.vmem [resolvable:$true] %s53
      %56 = dma.hbm_to_vmem [thread:$0]  %s3, 128, %s54, [#allocation10]
    $region17: #{tpu_custom_call.1} parent=1 // pred_fallthru
      _
    // Predicated region
    $region18: #{tpu_custom_call.1} parent=1 // pred_check
      _
    $region19: #{tpu_custom_call.1} parent=1 // pred_check_branch
      %58 = sbr.rel (0) target = $region21
    $region20: #{tpu_custom_call.1} parent=1 // pred_region
      _
    $region21: #{tpu_custom_call.1} parent=1 // pred_fallthru
      _
    // Predicated region
    $region22: #{tpu_custom_call.1} parent=1 // pred_check
      _
    $region23: #{tpu_custom_call.1} parent=1 // pred_check_branch
      %60 = sbr.rel (0) target = $region25
    $region24: #{tpu_custom_call.1} parent=1 // pred_region
      %61 = dma.done [#allocation4], 896
    $region25: #{tpu_custom_call.1} parent=1 // pred_fallthru
      _
    // Predicated region
    $region26: #{tpu_custom_call.1} parent=1 // pred_check
      _
    $region27: #{tpu_custom_call.1} parent=1 // pred_check_branch
      %63 = sbr.rel (0) target = $region29
    $region28: #{tpu_custom_call.1} parent=1 // pred_region
      %64 = dma.done [#allocation7], 50176
    $region29: #{tpu_custom_call.1} parent=1 // pred_fallthru
      _
    // Predicated region
    $region30: #{tpu_custom_call.1} parent=1 // pred_check
      _
    $region31: #{tpu_custom_call.1} parent=1 // pred_check_branch
      %66 = sbr.rel (0) target = $region33
    $region32: #{tpu_custom_call.1} parent=1 // pred_region
      %67 = dma.done [#allocation7], 128
    $region33: #{tpu_custom_call.1} parent=1 // pred_fallthru
      _
    // Predicated region
    $region34: #{tpu_custom_call.1} parent=1 // pred_check
      _
    $region35: #{tpu_custom_call.1} parent=1 // pred_check_branch
      %69 = sbr.rel (0) target = $region37
    $region36: #{tpu_custom_call.1} parent=1 // pred_region
      %70 = dma.done [#allocation10], 128
    $region37: #{tpu_custom_call.1} parent=1 // pred_fallthru
      _
    %v72 = vld [vmem:[#allocation3] sm:$0xff]
    %v73 = vld [vmem:[#allocation3 + $0x8] sm:$0xff]
    %v74 = vld [vmem:[#allocation3 + $0x10] sm:$0xff]
    %v75 = vld [vmem:[#allocation3 + $0x18] sm:$0xff]
    %v76 = vld [vmem:[#allocation3 + $0x20] sm:$0xff]
    %v77 = vld [vmem:[#allocation3 + $0x28] sm:$0xff]
    %v78 = vld [vmem:[#allocation3 + $0x30] sm:$0xff]
    %v79 = vpack.c.bf16 %v72, %v72
    %v80 = vpack.c.bf16 %v73, %v73
    %v81 = vpack.c.bf16 %v74, %v74
    %v82 = vpack.c.bf16 %v75, %v75
    %v83 = vpack.c.bf16 %v76, %v76
    %v84 = vpack.c.bf16 %v77, %v77
    %v85 = vpack.c.bf16 %v78, %v78
    %v86 = vld [vmem:[#allocation6] sm:$0xff]
    %v87 = vld [vmem:[#allocation6 + $0x8] sm:$0xff]
    %v88 = vld [vmem:[#allocation6 + $0x10] sm:$0xff]
    %v89 = vld [vmem:[#allocation6 + $0x18] sm:$0xff]
    %v90 = vld [vmem:[#allocation6 + $0x20] sm:$0xff]
    %v91 = vld [vmem:[#allocation6 + $0x28] sm:$0xff]
    %v92 = vld [vmem:[#allocation6 + $0x30] sm:$0xff]
    %v93 = vld [vmem:[#allocation6 + $0x38] sm:$0xff]
    %v94 = vld [vmem:[#allocation6 + $0x40] sm:$0xff]
    %v95 = vld [vmem:[#allocation6 + $0x48] sm:$0xff]
    %v96 = vld [vmem:[#allocation6 + $0x50] sm:$0xff]
    %v97 = vld [vmem:[#allocation6 + $0x58] sm:$0xff]
    %v98 = vld [vmem:[#allocation6 + $0x60] sm:$0xff]
    %v99 = vld [vmem:[#allocation6 + $0x68] sm:$0xff]
    %v100 = vld [vmem:[#allocation6 + $0x70] sm:$0xff]
    %v101 = vld [vmem:[#allocation6 + $0x78] sm:$0xff]
    %v102 = vld [vmem:[#allocation6 + $0x80] sm:$0xff]
    %v103 = vld [vmem:[#allocation6 + $0x88] sm:$0xff]
    %v104 = vld [vmem:[#allocation6 + $0x90] sm:$0xff]
    %v105 = vld [vmem:[#allocation6 + $0x98] sm:$0xff]
    %v106 = vld [vmem:[#allocation6 + $0xa0] sm:$0xff]
    %v107 = vld [vmem:[#allocation6 + $0xa8] sm:$0xff]
    %v108 = vld [vmem:[#allocation6 + $0xb0] sm:$0xff]
    %v109 = vld [vmem:[#allocation6 + $0xb8] sm:$0xff]
    %v110 = vld [vmem:[#allocation6 + $0xc0] sm:$0xff]
    %v111 = vld [vmem:[#allocation6 + $0xc8] sm:$0xff]
    %v112 = vld [vmem:[#allocation6 + $0xd0] sm:$0xff]
    %v113 = vld [vmem:[#allocation6 + $0xd8] sm:$0xff]
    %v114 = vld [vmem:[#allocation6 + $0xe0] sm:$0xff]
    %v115 = vld [vmem:[#allocation6 + $0xe8] sm:$0xff]
    %v116 = vld [vmem:[#allocation6 + $0xf0] sm:$0xff]
    %v117 = vld [vmem:[#allocation6 + $0xf8] sm:$0xff]
    %v118 = vld [vmem:[#allocation6 + $0x100] sm:$0xff]
    %v119 = vld [vmem:[#allocation6 + $0x108] sm:$0xff]
    %v120 = vld [vmem:[#allocation6 + $0x110] sm:$0xff]
    %v121 = vld [vmem:[#allocation6 + $0x118] sm:$0xff]
    %v122 = vld [vmem:[#allocation6 + $0x120] sm:$0xff]
    %v123 = vld [vmem:[#allocation6 + $0x128] sm:$0xff]
    %v124 = vld [vmem:[#allocation6 + $0x130] sm:$0xff]
    %v125 = vld [vmem:[#allocation6 + $0x138] sm:$0xff]
    %v126 = vld [vmem:[#allocation6 + $0x140] sm:$0xff]
    %v127 = vld [vmem:[#allocation6 + $0x148] sm:$0xff]
    %v128 = vld [vmem:[#allocation6 + $0x150] sm:$0xff]
    %v129 = vld [vmem:[#allocation6 + $0x158] sm:$0xff]
    %v130 = vld [vmem:[#allocation6 + $0x160] sm:$0xff]
    %v131 = vld [vmem:[#allocation6 + $0x168] sm:$0xff]
    %v132 = vld [vmem:[#allocation6 + $0x170] sm:$0xff]
    %v133 = vld [vmem:[#allocation6 + $0x178] sm:$0xff]
    %v134 = vld [vmem:[#allocation6 + $0x180] sm:$0xff]
    %v135 = vld [vmem:[#allocation6 + $0x188] sm:$0xff]
    %v136 = vld [vmem:[#allocation6 + $0x190] sm:$0xff]
    %v137 = vld [vmem:[#allocation6 + $0x198] sm:$0xff]
    %v138 = vld [vmem:[#allocation6 + $0x1a0] sm:$0xff]
    %v139 = vld [vmem:[#allocation6 + $0x1a8] sm:$0xff]
    %v140 = vld [vmem:[#allocation6 + $0x1b0] sm:$0xff]
    %v141 = vld [vmem:[#allocation6 + $0x1b8] sm:$0xff]
    %v142 = vld [vmem:[#allocation6 + $0x1c0] sm:$0xff]
    %v143 = vld [vmem:[#allocation6 + $0x1c8] sm:$0xff]
    %v144 = vld [vmem:[#allocation6 + $0x1d0] sm:$0xff]
    %v145 = vld [vmem:[#allocation6 + $0x1d8] sm:$0xff]
    %v146 = vld [vmem:[#allocation6 + $0x1e0] sm:$0xff]
    %v147 = vld [vmem:[#allocation6 + $0x1e8] sm:$0xff]
    %v148 = vld [vmem:[#allocation6 + $0x1f0] sm:$0xff]
    %v149 = vld [vmem:[#allocation6 + $0x1f8] sm:$0xff]
    %v150 = vld [vmem:[#allocation6 + $0x200] sm:$0xff]
    %v151 = vld [vmem:[#allocation6 + $0x208] sm:$0xff]
    %v152 = vld [vmem:[#allocation6 + $0x210] sm:$0xff]
    %v153 = vld [vmem:[#allocation6 + $0x218] sm:$0xff]
    %v154 = vld [vmem:[#allocation6 + $0x220] sm:$0xff]
    %v155 = vld [vmem:[#allocation6 + $0x228] sm:$0xff]
    %v156 = vld [vmem:[#allocation6 + $0x230] sm:$0xff]
    %v157 = vld [vmem:[#allocation6 + $0x238] sm:$0xff]
    %v158 = vld [vmem:[#allocation6 + $0x240] sm:$0xff]
    %v159 = vld [vmem:[#allocation6 + $0x248] sm:$0xff]
    %v160 = vld [vmem:[#allocation6 + $0x250] sm:$0xff]
    %v161 = vld [vmem:[#allocation6 + $0x258] sm:$0xff]
    %v162 = vld [vmem:[#allocation6 + $0x260] sm:$0xff]
    %v163 = vld [vmem:[#allocation6 + $0x268] sm:$0xff]
    %v164 = vld [vmem:[#allocation6 + $0x270] sm:$0xff]
    %v165 = vld [vmem:[#allocation6 + $0x278] sm:$0xff]
    %v166 = vld [vmem:[#allocation6 + $0x280] sm:$0xff]
    %v167 = vld [vmem:[#allocation6 + $0x288] sm:$0xff]
    %v168 = vld [vmem:[#allocation6 + $0x290] sm:$0xff]
    %v169 = vld [vmem:[#allocation6 + $0x298] sm:$0xff]
    %v170 = vld [vmem:[#allocation6 + $0x2a0] sm:$0xff]
    %v171 = vld [vmem:[#allocation6 + $0x2a8] sm:$0xff]
    %v172 = vld [vmem:[#allocation6 + $0x2b0] sm:$0xff]
    %v173 = vld [vmem:[#allocation6 + $0x2b8] sm:$0xff]
    %v174 = vld [vmem:[#allocation6 + $0x2c0] sm:$0xff]
    %v175 = vld [vmem:[#allocation6 + $0x2c8] sm:$0xff]
    %v176 = vld [vmem:[#allocation6 + $0x2d0] sm:$0xff]
    %v177 = vld [vmem:[#allocation6 + $0x2d8] sm:$0xff]
    %v178 = vld [vmem:[#allocation6 + $0x2e0] sm:$0xff]
    %v179 = vld [vmem:[#allocation6 + $0x2e8] sm:$0xff]
    %v180 = vld [vmem:[#allocation6 + $0x2f0] sm:$0xff]
    %v181 = vld [vmem:[#allocation6 + $0x2f8] sm:$0xff]
    %v182 = vld [vmem:[#allocation6 + $0x300] sm:$0xff]
    %v183 = vld [vmem:[#allocation6 + $0x308] sm:$0xff]
    %v184 = vld [vmem:[#allocation6 + $0x310] sm:$0xff]
    %v185 = vld [vmem:[#allocation6 + $0x318] sm:$0xff]
    %v186 = vld [vmem:[#allocation6 + $0x320] sm:$0xff]
    %v187 = vld [vmem:[#allocation6 + $0x328] sm:$0xff]
    %v188 = vld [vmem:[#allocation6 + $0x330] sm:$0xff]
    %v189 = vld [vmem:[#allocation6 + $0x338] sm:$0xff]
    %v190 = vld [vmem:[#allocation6 + $0x340] sm:$0xff]
    %v191 = vld [vmem:[#allocation6 + $0x348] sm:$0xff]
    %v192 = vld [vmem:[#allocation6 + $0x350] sm:$0xff]
    %v193 = vld [vmem:[#allocation6 + $0x358] sm:$0xff]
    %v194 = vld [vmem:[#allocation6 + $0x360] sm:$0xff]
    %v195 = vld [vmem:[#allocation6 + $0x368] sm:$0xff]
    %v196 = vld [vmem:[#allocation6 + $0x370] sm:$0xff]
    %v197 = vld [vmem:[#allocation6 + $0x378] sm:$0xff]
    %v198 = vld [vmem:[#allocation6 + $0x380] sm:$0xff]
    %v199 = vld [vmem:[#allocation6 + $0x388] sm:$0xff]
    %v200 = vld [vmem:[#allocation6 + $0x390] sm:$0xff]
    %v201 = vld [vmem:[#allocation6 + $0x398] sm:$0xff]
    %v202 = vld [vmem:[#allocation6 + $0x3a0] sm:$0xff]
    %v203 = vld [vmem:[#allocation6 + $0x3a8] sm:$0xff]
    %v204 = vld [vmem:[#allocation6 + $0x3b0] sm:$0xff]
    %v205 = vld [vmem:[#allocation6 + $0x3b8] sm:$0xff]
    %v206 = vld [vmem:[#allocation6 + $0x3c0] sm:$0xff]
    %v207 = vld [vmem:[#allocation6 + $0x3c8] sm:$0xff]
    %v208 = vld [vmem:[#allocation6 + $0x3d0] sm:$0xff]
    %v209 = vld [vmem:[#allocation6 + $0x3d8] sm:$0xff]
    %v210 = vld [vmem:[#allocation6 + $0x3e0] sm:$0xff]
    %v211 = vld [vmem:[#allocation6 + $0x3e8] sm:$0xff]
    %v212 = vld [vmem:[#allocation6 + $0x3f0] sm:$0xff]
    %v213 = vld [vmem:[#allocation6 + $0x3f8] sm:$0xff]
    %v214 = vld [vmem:[#allocation6 + $0x400] sm:$0xff]
    %v215 = vld [vmem:[#allocation6 + $0x408] sm:$0xff]
    %v216 = vld [vmem:[#allocation6 + $0x410] sm:$0xff]
    %v217 = vld [vmem:[#allocation6 + $0x418] sm:$0xff]
    %v218 = vld [vmem:[#allocation6 + $0x420] sm:$0xff]
    %v219 = vld [vmem:[#allocation6 + $0x428] sm:$0xff]
    %v220 = vld [vmem:[#allocation6 + $0x430] sm:$0xff]
    %v221 = vld [vmem:[#allocation6 + $0x438] sm:$0xff]
    %v222 = vld [vmem:[#allocation6 + $0x440] sm:$0xff]
    %v223 = vld [vmem:[#allocation6 + $0x448] sm:$0xff]
    %v224 = vld [vmem:[#allocation6 + $0x450] sm:$0xff]
    %v225 = vld [vmem:[#allocation6 + $0x458] sm:$0xff]
    %v226 = vld [vmem:[#allocation6 + $0x460] sm:$0xff]
    %v227 = vld [vmem:[#allocation6 + $0x468] sm:$0xff]
    %v228 = vld [vmem:[#allocation6 + $0x470] sm:$0xff]
    %v229 = vld [vmem:[#allocation6 + $0x478] sm:$0xff]
    %v230 = vld [vmem:[#allocation6 + $0x480] sm:$0xff]
    %v231 = vld [vmem:[#allocation6 + $0x488] sm:$0xff]
    %v232 = vld [vmem:[#allocation6 + $0x490] sm:$0xff]
    %v233 = vld [vmem:[#allocation6 + $0x498] sm:$0xff]
    %v234 = vld [vmem:[#allocation6 + $0x4a0] sm:$0xff]
    %v235 = vld [vmem:[#allocation6 + $0x4a8] sm:$0xff]
    %v236 = vld [vmem:[#allocation6 + $0x4b0] sm:$0xff]
    %v237 = vld [vmem:[#allocation6 + $0x4b8] sm:$0xff]
    %v238 = vld [vmem:[#allocation6 + $0x4c0] sm:$0xff]
    %v239 = vld [vmem:[#allocation6 + $0x4c8] sm:$0xff]
    %v240 = vld [vmem:[#allocation6 + $0x4d0] sm:$0xff]
    %v241 = vld [vmem:[#allocation6 + $0x4d8] sm:$0xff]
    %v242 = vld [vmem:[#allocation6 + $0x4e0] sm:$0xff]
    %v243 = vld [vmem:[#allocation6 + $0x4e8] sm:$0xff]
    %v244 = vld [vmem:[#allocation6 + $0x4f0] sm:$0xff]
    %v245 = vld [vmem:[#allocation6 + $0x4f8] sm:$0xff]
    %v246 = vld [vmem:[#allocation6 + $0x500] sm:$0xff]
    %v247 = vld [vmem:[#allocation6 + $0x508] sm:$0xff]
    %v248 = vld [vmem:[#allocation6 + $0x510] sm:$0xff]
    %v249 = vld [vmem:[#allocation6 + $0x518] sm:$0xff]
    %v250 = vld [vmem:[#allocation6 + $0x520] sm:$0xff]
    %v251 = vld [vmem:[#allocation6 + $0x528] sm:$0xff]
    %v252 = vld [vmem:[#allocation6 + $0x530] sm:$0xff]
    %v253 = vld [vmem:[#allocation6 + $0x538] sm:$0xff]
    %v254 = vld [vmem:[#allocation6 + $0x540] sm:$0xff]
    %v255 = vld [vmem:[#allocation6 + $0x548] sm:$0xff]
    %v256 = vld [vmem:[#allocation6 + $0x550] sm:$0xff]
    %v257 = vld [vmem:[#allocation6 + $0x558] sm:$0xff]
    %v258 = vld [vmem:[#allocation6 + $0x560] sm:$0xff]
    %v259 = vld [vmem:[#allocation6 + $0x568] sm:$0xff]
    %v260 = vld [vmem:[#allocation6 + $0x570] sm:$0xff]
    %v261 = vld [vmem:[#allocation6 + $0x578] sm:$0xff]
    %v262 = vld [vmem:[#allocation6 + $0x580] sm:$0xff]
    %v263 = vld [vmem:[#allocation6 + $0x588] sm:$0xff]
    %v264 = vld [vmem:[#allocation6 + $0x590] sm:$0xff]
    %v265 = vld [vmem:[#allocation6 + $0x598] sm:$0xff]
    %v266 = vld [vmem:[#allocation6 + $0x5a0] sm:$0xff]
    %v267 = vld [vmem:[#allocation6 + $0x5a8] sm:$0xff]
    %v268 = vld [vmem:[#allocation6 + $0x5b0] sm:$0xff]
    %v269 = vld [vmem:[#allocation6 + $0x5b8] sm:$0xff]
    %v270 = vld [vmem:[#allocation6 + $0x5c0] sm:$0xff]
    %v271 = vld [vmem:[#allocation6 + $0x5c8] sm:$0xff]
    %v272 = vld [vmem:[#allocation6 + $0x5d0] sm:$0xff]
    %v273 = vld [vmem:[#allocation6 + $0x5d8] sm:$0xff]
    %v274 = vld [vmem:[#allocation6 + $0x5e0] sm:$0xff]
    %v275 = vld [vmem:[#allocation6 + $0x5e8] sm:$0xff]
    %v276 = vld [vmem:[#allocation6 + $0x5f0] sm:$0xff]
    %v277 = vld [vmem:[#allocation6 + $0x5f8] sm:$0xff]
    %v278 = vld [vmem:[#allocation6 + $0x600] sm:$0xff]
    %v279 = vld [vmem:[#allocation6 + $0x608] sm:$0xff]
    %v280 = vld [vmem:[#allocation6 + $0x610] sm:$0xff]
    %v281 = vld [vmem:[#allocation6 + $0x618] sm:$0xff]
    %v282 = vld [vmem:[#allocation6 + $0x620] sm:$0xff]
    %v283 = vld [vmem:[#allocation6 + $0x628] sm:$0xff]
    %v284 = vld [vmem:[#allocation6 + $0x630] sm:$0xff]
    %v285 = vld [vmem:[#allocation6 + $0x638] sm:$0xff]
    %v286 = vld [vmem:[#allocation6 + $0x640] sm:$0xff]
    %v287 = vld [vmem:[#allocation6 + $0x648] sm:$0xff]
    %v288 = vld [vmem:[#allocation6 + $0x650] sm:$0xff]
    %v289 = vld [vmem:[#allocation6 + $0x658] sm:$0xff]
    %v290 = vld [vmem:[#allocation6 + $0x660] sm:$0xff]
    %v291 = vld [vmem:[#allocation6 + $0x668] sm:$0xff]
    %v292 = vld [vmem:[#allocation6 + $0x670] sm:$0xff]
    %v293 = vld [vmem:[#allocation6 + $0x678] sm:$0xff]
    %v294 = vld [vmem:[#allocation6 + $0x680] sm:$0xff]
    %v295 = vld [vmem:[#allocation6 + $0x688] sm:$0xff]
    %v296 = vld [vmem:[#allocation6 + $0x690] sm:$0xff]
    %v297 = vld [vmem:[#allocation6 + $0x698] sm:$0xff]
    %v298 = vld [vmem:[#allocation6 + $0x6a0] sm:$0xff]
    %v299 = vld [vmem:[#allocation6 + $0x6a8] sm:$0xff]
    %v300 = vld [vmem:[#allocation6 + $0x6b0] sm:$0xff]
    %v301 = vld [vmem:[#allocation6 + $0x6b8] sm:$0xff]
    %v302 = vld [vmem:[#allocation6 + $0x6c0] sm:$0xff]
    %v303 = vld [vmem:[#allocation6 + $0x6c8] sm:$0xff]
    %v304 = vld [vmem:[#allocation6 + $0x6d0] sm:$0xff]
    %v305 = vld [vmem:[#allocation6 + $0x6d8] sm:$0xff]
    %v306 = vld [vmem:[#allocation6 + $0x6e0] sm:$0xff]
    %v307 = vld [vmem:[#allocation6 + $0x6e8] sm:$0xff]
    %v308 = vld [vmem:[#allocation6 + $0x6f0] sm:$0xff]
    %v309 = vld [vmem:[#allocation6 + $0x6f8] sm:$0xff]
    %v310 = vld [vmem:[#allocation6 + $0x700] sm:$0xff]
    %v311 = vld [vmem:[#allocation6 + $0x708] sm:$0xff]
    %v312 = vld [vmem:[#allocation6 + $0x710] sm:$0xff]
    %v313 = vld [vmem:[#allocation6 + $0x718] sm:$0xff]
    %v314 = vld [vmem:[#allocation6 + $0x720] sm:$0xff]
    %v315 = vld [vmem:[#allocation6 + $0x728] sm:$0xff]
    %v316 = vld [vmem:[#allocation6 + $0x730] sm:$0xff]
    %v317 = vld [vmem:[#allocation6 + $0x738] sm:$0xff]
    %v318 = vld [vmem:[#allocation6 + $0x740] sm:$0xff]
    %v319 = vld [vmem:[#allocation6 + $0x748] sm:$0xff]
    %v320 = vld [vmem:[#allocation6 + $0x750] sm:$0xff]
    %v321 = vld [vmem:[#allocation6 + $0x758] sm:$0xff]
    %v322 = vld [vmem:[#allocation6 + $0x760] sm:$0xff]
    %v323 = vld [vmem:[#allocation6 + $0x768] sm:$0xff]
    %v324 = vld [vmem:[#allocation6 + $0x770] sm:$0xff]
    %v325 = vld [vmem:[#allocation6 + $0x778] sm:$0xff]
    %v326 = vld [vmem:[#allocation6 + $0x780] sm:$0xff]
    %v327 = vld [vmem:[#allocation6 + $0x788] sm:$0xff]
    %v328 = vld [vmem:[#allocation6 + $0x790] sm:$0xff]
    %v329 = vld [vmem:[#allocation6 + $0x798] sm:$0xff]
    %v330 = vld [vmem:[#allocation6 + $0x7a0] sm:$0xff]
    %v331 = vld [vmem:[#allocation6 + $0x7a8] sm:$0xff]
    %v332 = vld [vmem:[#allocation6 + $0x7b0] sm:$0xff]
    %v333 = vld [vmem:[#allocation6 + $0x7b8] sm:$0xff]
    %v334 = vld [vmem:[#allocation6 + $0x7c0] sm:$0xff]
    %v335 = vld [vmem:[#allocation6 + $0x7c8] sm:$0xff]
    %v336 = vld [vmem:[#allocation6 + $0x7d0] sm:$0xff]
    %v337 = vld [vmem:[#allocation6 + $0x7d8] sm:$0xff]
    %v338 = vld [vmem:[#allocation6 + $0x7e0] sm:$0xff]
    %v339 = vld [vmem:[#allocation6 + $0x7e8] sm:$0xff]
    %v340 = vld [vmem:[#allocation6 + $0x7f0] sm:$0xff]
    %v341 = vld [vmem:[#allocation6 + $0x7f8] sm:$0xff]
    %v342 = vld [vmem:[#allocation6 + $0x800] sm:$0xff]
    %v343 = vld [vmem:[#allocation6 + $0x808] sm:$0xff]
    %v344 = vld [vmem:[#allocation6 + $0x810] sm:$0xff]
    %v345 = vld [vmem:[#allocation6 + $0x818] sm:$0xff]
    %v346 = vld [vmem:[#allocation6 + $0x820] sm:$0xff]
    %v347 = vld [vmem:[#allocation6 + $0x828] sm:$0xff]
    %v348 = vld [vmem:[#allocation6 + $0x830] sm:$0xff]
    %v349 = vld [vmem:[#allocation6 + $0x838] sm:$0xff]
    %v350 = vld [vmem:[#allocation6 + $0x840] sm:$0xff]
    %v351 = vld [vmem:[#allocation6 + $0x848] sm:$0xff]
    %v352 = vld [vmem:[#allocation6 + $0x850] sm:$0xff]
    %v353 = vld [vmem:[#allocation6 + $0x858] sm:$0xff]
    %v354 = vld [vmem:[#allocation6 + $0x860] sm:$0xff]
    %v355 = vld [vmem:[#allocation6 + $0x868] sm:$0xff]
    %v356 = vld [vmem:[#allocation6 + $0x870] sm:$0xff]
    %v357 = vld [vmem:[#allocation6 + $0x878] sm:$0xff]
    %v358 = vld [vmem:[#allocation6 + $0x880] sm:$0xff]
    %v359 = vld [vmem:[#allocation6 + $0x888] sm:$0xff]
    %v360 = vld [vmem:[#allocation6 + $0x890] sm:$0xff]
    %v361 = vld [vmem:[#allocation6 + $0x898] sm:$0xff]
    %v362 = vld [vmem:[#allocation6 + $0x8a0] sm:$0xff]
    %v363 = vld [vmem:[#allocation6 + $0x8a8] sm:$0xff]
    %v364 = vld [vmem:[#allocation6 + $0x8b0] sm:$0xff]
    %v365 = vld [vmem:[#allocation6 + $0x8b8] sm:$0xff]
    %v366 = vld [vmem:[#allocation6 + $0x8c0] sm:$0xff]
    %v367 = vld [vmem:[#allocation6 + $0x8c8] sm:$0xff]
    %v368 = vld [vmem:[#allocation6 + $0x8d0] sm:$0xff]
    %v369 = vld [vmem:[#allocation6 + $0x8d8] sm:$0xff]
    %v370 = vld [vmem:[#allocation6 + $0x8e0] sm:$0xff]
    %v371 = vld [vmem:[#allocation6 + $0x8e8] sm:$0xff]
    %v372 = vld [vmem:[#allocation6 + $0x8f0] sm:$0xff]
    %v373 = vld [vmem:[#allocation6 + $0x8f8] sm:$0xff]
    %v374 = vld [vmem:[#allocation6 + $0x900] sm:$0xff]
    %v375 = vld [vmem:[#allocation6 + $0x908] sm:$0xff]
    %v376 = vld [vmem:[#allocation6 + $0x910] sm:$0xff]
    %v377 = vld [vmem:[#allocation6 + $0x918] sm:$0xff]
    %v378 = vld [vmem:[#allocation6 + $0x920] sm:$0xff]
    %v379 = vld [vmem:[#allocation6 + $0x928] sm:$0xff]
    %v380 = vld [vmem:[#allocation6 + $0x930] sm:$0xff]
    %v381 = vld [vmem:[#allocation6 + $0x938] sm:$0xff]
    %v382 = vld [vmem:[#allocation6 + $0x940] sm:$0xff]
    %v383 = vld [vmem:[#allocation6 + $0x948] sm:$0xff]
    %v384 = vld [vmem:[#allocation6 + $0x950] sm:$0xff]
    %v385 = vld [vmem:[#allocation6 + $0x958] sm:$0xff]
    %v386 = vld [vmem:[#allocation6 + $0x960] sm:$0xff]
    %v387 = vld [vmem:[#allocation6 + $0x968] sm:$0xff]
    %v388 = vld [vmem:[#allocation6 + $0x970] sm:$0xff]
    %v389 = vld [vmem:[#allocation6 + $0x978] sm:$0xff]
    %v390 = vld [vmem:[#allocation6 + $0x980] sm:$0xff]
    %v391 = vld [vmem:[#allocation6 + $0x988] sm:$0xff]
    %v392 = vld [vmem:[#allocation6 + $0x990] sm:$0xff]
    %v393 = vld [vmem:[#allocation6 + $0x998] sm:$0xff]
    %v394 = vld [vmem:[#allocation6 + $0x9a0] sm:$0xff]
    %v395 = vld [vmem:[#allocation6 + $0x9a8] sm:$0xff]
    %v396 = vld [vmem:[#allocation6 + $0x9b0] sm:$0xff]
    %v397 = vld [vmem:[#allocation6 + $0x9b8] sm:$0xff]
    %v398 = vld [vmem:[#allocation6 + $0x9c0] sm:$0xff]
    %v399 = vld [vmem:[#allocation6 + $0x9c8] sm:$0xff]
    %v400 = vld [vmem:[#allocation6 + $0x9d0] sm:$0xff]
    %v401 = vld [vmem:[#allocation6 + $0x9d8] sm:$0xff]
    %v402 = vld [vmem:[#allocation6 + $0x9e0] sm:$0xff]
    %v403 = vld [vmem:[#allocation6 + $0x9e8] sm:$0xff]
    %v404 = vld [vmem:[#allocation6 + $0x9f0] sm:$0xff]
    %v405 = vld [vmem:[#allocation6 + $0x9f8] sm:$0xff]
    %v406 = vld [vmem:[#allocation6 + $0xa00] sm:$0xff]
    %v407 = vld [vmem:[#allocation6 + $0xa08] sm:$0xff]
    %v408 = vld [vmem:[#allocation6 + $0xa10] sm:$0xff]
    %v409 = vld [vmem:[#allocation6 + $0xa18] sm:$0xff]
    %v410 = vld [vmem:[#allocation6 + $0xa20] sm:$0xff]
    %v411 = vld [vmem:[#allocation6 + $0xa28] sm:$0xff]
    %v412 = vld [vmem:[#allocation6 + $0xa30] sm:$0xff]
    %v413 = vld [vmem:[#allocation6 + $0xa38] sm:$0xff]
    %v414 = vld [vmem:[#allocation6 + $0xa40] sm:$0xff]
    %v415 = vld [vmem:[#allocation6 + $0xa48] sm:$0xff]
    %v416 = vld [vmem:[#allocation6 + $0xa50] sm:$0xff]
    %v417 = vld [vmem:[#allocation6 + $0xa58] sm:$0xff]
    %v418 = vld [vmem:[#allocation6 + $0xa60] sm:$0xff]
    %v419 = vld [vmem:[#allocation6 + $0xa68] sm:$0xff]
    %v420 = vld [vmem:[#allocation6 + $0xa70] sm:$0xff]
    %v421 = vld [vmem:[#allocation6 + $0xa78] sm:$0xff]
    %v422 = vld [vmem:[#allocation6 + $0xa80] sm:$0xff]
    %v423 = vld [vmem:[#allocation6 + $0xa88] sm:$0xff]
    %v424 = vld [vmem:[#allocation6 + $0xa90] sm:$0xff]
    %v425 = vld [vmem:[#allocation6 + $0xa98] sm:$0xff]
    %v426 = vld [vmem:[#allocation6 + $0xaa0] sm:$0xff]
    %v427 = vld [vmem:[#allocation6 + $0xaa8] sm:$0xff]
    %v428 = vld [vmem:[#allocation6 + $0xab0] sm:$0xff]
    %v429 = vld [vmem:[#allocation6 + $0xab8] sm:$0xff]
    %v430 = vld [vmem:[#allocation6 + $0xac0] sm:$0xff]
    %v431 = vld [vmem:[#allocation6 + $0xac8] sm:$0xff]
    %v432 = vld [vmem:[#allocation6 + $0xad0] sm:$0xff]
    %v433 = vld [vmem:[#allocation6 + $0xad8] sm:$0xff]
    %v434 = vld [vmem:[#allocation6 + $0xae0] sm:$0xff]
    %v435 = vld [vmem:[#allocation6 + $0xae8] sm:$0xff]
    %v436 = vld [vmem:[#allocation6 + $0xaf0] sm:$0xff]
    %v437 = vld [vmem:[#allocation6 + $0xaf8] sm:$0xff]
    %v438 = vld [vmem:[#allocation6 + $0xb00] sm:$0xff]
    %v439 = vld [vmem:[#allocation6 + $0xb08] sm:$0xff]
    %v440 = vld [vmem:[#allocation6 + $0xb10] sm:$0xff]
    %v441 = vld [vmem:[#allocation6 + $0xb18] sm:$0xff]
    %v442 = vld [vmem:[#allocation6 + $0xb20] sm:$0xff]
    %v443 = vld [vmem:[#allocation6 + $0xb28] sm:$0xff]
    %v444 = vld [vmem:[#allocation6 + $0xb30] sm:$0xff]
    %v445 = vld [vmem:[#allocation6 + $0xb38] sm:$0xff]
    %v446 = vld [vmem:[#allocation6 + $0xb40] sm:$0xff]
    %v447 = vld [vmem:[#allocation6 + $0xb48] sm:$0xff]
    %v448 = vld [vmem:[#allocation6 + $0xb50] sm:$0xff]
    %v449 = vld [vmem:[#allocation6 + $0xb58] sm:$0xff]
    %v450 = vld [vmem:[#allocation6 + $0xb60] sm:$0xff]
    %v451 = vld [vmem:[#allocation6 + $0xb68] sm:$0xff]
    %v452 = vld [vmem:[#allocation6 + $0xb70] sm:$0xff]
    %v453 = vld [vmem:[#allocation6 + $0xb78] sm:$0xff]
    %v454 = vld [vmem:[#allocation6 + $0xb80] sm:$0xff]
    %v455 = vld [vmem:[#allocation6 + $0xb88] sm:$0xff]
    %v456 = vld [vmem:[#allocation6 + $0xb90] sm:$0xff]
    %v457 = vld [vmem:[#allocation6 + $0xb98] sm:$0xff]
    %v458 = vld [vmem:[#allocation6 + $0xba0] sm:$0xff]
    %v459 = vld [vmem:[#allocation6 + $0xba8] sm:$0xff]
    %v460 = vld [vmem:[#allocation6 + $0xbb0] sm:$0xff]
    %v461 = vld [vmem:[#allocation6 + $0xbb8] sm:$0xff]
    %v462 = vld [vmem:[#allocation6 + $0xbc0] sm:$0xff]
    %v463 = vld [vmem:[#allocation6 + $0xbc8] sm:$0xff]
    %v464 = vld [vmem:[#allocation6 + $0xbd0] sm:$0xff]
    %v465 = vld [vmem:[#allocation6 + $0xbd8] sm:$0xff]
    %v466 = vld [vmem:[#allocation6 + $0xbe0] sm:$0xff]
    %v467 = vld [vmem:[#allocation6 + $0xbe8] sm:$0xff]
    %v468 = vld [vmem:[#allocation6 + $0xbf0] sm:$0xff]
    %v469 = vld [vmem:[#allocation6 + $0xbf8] sm:$0xff]
    %v470 = vld [vmem:[#allocation6 + $0xc00] sm:$0xff]
    %v471 = vld [vmem:[#allocation6 + $0xc08] sm:$0xff]
    %v472 = vld [vmem:[#allocation6 + $0xc10] sm:$0xff]
    %v473 = vld [vmem:[#allocation6 + $0xc18] sm:$0xff]
    %v474 = vld [vmem:[#allocation6 + $0xc20] sm:$0xff]
    %v475 = vld [vmem:[#allocation6 + $0xc28] sm:$0xff]
    %v476 = vld [vmem:[#allocation6 + $0xc30] sm:$0xff]
    %v477 = vld [vmem:[#allocation6 + $0xc38] sm:$0xff]
    %v478 = vld [vmem:[#allocation8] sm:$0xff]
    %v480 = vlaneseq
    %v481 = vshrl.u32 %v480, 7
    %v482 = vsub.s32 0, %v481
    %v483 = vrot.slane %v478, %v482
    %v484 = vlaneseq
    %v485 = vshrl.u32 %v484, 7
    %v486 = vsub.s32 1, %v485
    %v487 = vrot.slane %v478, %v486
    %v488 = vlaneseq
    %v489 = vshrl.u32 %v488, 7
    %v490 = vsub.s32 2, %v489
    %v491 = vrot.slane %v478, %v490
    %v492 = vlaneseq
    %v493 = vshrl.u32 %v492, 7
    %v494 = vsub.s32 3, %v493
    %v495 = vrot.slane %v478, %v494
    %v496 = vlaneseq
    %v497 = vshrl.u32 %v496, 7
    %v498 = vsub.s32 4, %v497
    %v499 = vrot.slane %v478, %v498
    %v500 = vlaneseq
    %v501 = vshrl.u32 %v500, 7
    %v502 = vsub.s32 5, %v501
    %v503 = vrot.slane %v478, %v502
    %v504 = vlaneseq
    %v505 = vshrl.u32 %v504, 7
    %v506 = vsub.s32 6, %v505
    %v507 = vrot.slane %v478, %v506
    %v508 = vlaneseq
    %v509 = vshrl.u32 %v508, 7
    %v510 = vsub.s32 7, %v509
    %v511 = vrot.slane %v478, %v510
    %v912 = vunpack.c.l.b16 %v86
    %v913 = vunpack.c.h.b16 %v86
    %v914 = vunpack.c.l.b16 %v87
    %v915 = vunpack.c.h.b16 %v87
    %v916 = vunpack.c.l.b16 %v88
    %v917 = vunpack.c.h.b16 %v88
    %v918 = vunpack.c.l.b16 %v89
    %v919 = vunpack.c.h.b16 %v89
    %v920 = vunpack.c.l.b16 %v90
    %v921 = vunpack.c.h.b16 %v90
    %v922 = vunpack.c.l.b16 %v91
    %v923 = vunpack.c.h.b16 %v91
    %v924 = vunpack.c.l.b16 %v92
    %v925 = vunpack.c.h.b16 %v92
    %v926 = vunpack.c.l.b16 %v93
    %v927 = vunpack.c.h.b16 %v93
    %v928 = vunpack.c.l.b16 %v94
    %v929 = vunpack.c.h.b16 %v94
    %v930 = vunpack.c.l.b16 %v95
    %v931 = vunpack.c.h.b16 %v95
    %v932 = vunpack.c.l.b16 %v96
    %v933 = vunpack.c.h.b16 %v96
    %v934 = vunpack.c.l.b16 %v97
    %v935 = vunpack.c.h.b16 %v97
    %v936 = vunpack.c.l.b16 %v98
    %v937 = vunpack.c.h.b16 %v98
    %v938 = vunpack.c.l.b16 %v99
    %v939 = vunpack.c.h.b16 %v99
    %v940 = vunpack.c.l.b16 %v100
    %v941 = vunpack.c.h.b16 %v100
    %v942 = vunpack.c.l.b16 %v101
    %v943 = vunpack.c.h.b16 %v101
    %v944 = vunpack.c.l.b16 %v102
    %v945 = vunpack.c.h.b16 %v102
    %v946 = vunpack.c.l.b16 %v103
    %v947 = vunpack.c.h.b16 %v103
    %v948 = vunpack.c.l.b16 %v104
    %v949 = vunpack.c.h.b16 %v104
    %v950 = vunpack.c.l.b16 %v105
    %v951 = vunpack.c.h.b16 %v105
    %v952 = vunpack.c.l.b16 %v106
    %v953 = vunpack.c.h.b16 %v106
    %v954 = vunpack.c.l.b16 %v107
    %v955 = vunpack.c.h.b16 %v107
    %v956 = vunpack.c.l.b16 %v108
    %v957 = vunpack.c.h.b16 %v108
    %v958 = vunpack.c.l.b16 %v109
    %v959 = vunpack.c.h.b16 %v109
    %v960 = vunpack.c.l.b16 %v110
    %v961 = vunpack.c.h.b16 %v110
    %v962 = vunpack.c.l.b16 %v111
    %v963 = vunpack.c.h.b16 %v111
    %v964 = vunpack.c.l.b16 %v112
    %v965 = vunpack.c.h.b16 %v112
    %v966 = vunpack.c.l.b16 %v113
    %v967 = vunpack.c.h.b16 %v113
    %v968 = vunpack.c.l.b16 %v114
    %v969 = vunpack.c.h.b16 %v114
    %v970 = vunpack.c.l.b16 %v115
    %v971 = vunpack.c.h.b16 %v115
    %v972 = vunpack.c.l.b16 %v116
    %v973 = vunpack.c.h.b16 %v116
    %v974 = vunpack.c.l.b16 %v117
    %v975 = vunpack.c.h.b16 %v117
    %v976 = vunpack.c.l.b16 %v118
    %v977 = vunpack.c.h.b16 %v118
    %v978 = vunpack.c.l.b16 %v119
    %v979 = vunpack.c.h.b16 %v119
    %v980 = vunpack.c.l.b16 %v120
    %v981 = vunpack.c.h.b16 %v120
    %v982 = vunpack.c.l.b16 %v121
    %v983 = vunpack.c.h.b16 %v121
    %v984 = vunpack.c.l.b16 %v122
    %v985 = vunpack.c.h.b16 %v122
    %v986 = vunpack.c.l.b16 %v123
    %v987 = vunpack.c.h.b16 %v123
    %v988 = vunpack.c.l.b16 %v124
    %v989 = vunpack.c.h.b16 %v124
    %v990 = vunpack.c.l.b16 %v125
    %v991 = vunpack.c.h.b16 %v125
    %v992 = vunpack.c.l.b16 %v126
    %v993 = vunpack.c.h.b16 %v126
    %v994 = vunpack.c.l.b16 %v127
    %v995 = vunpack.c.h.b16 %v127
    %v996 = vunpack.c.l.b16 %v128
    %v997 = vunpack.c.h.b16 %v128
    %v998 = vunpack.c.l.b16 %v129
    %v999 = vunpack.c.h.b16 %v129
    %v1000 = vunpack.c.l.b16 %v130
    %v1001 = vunpack.c.h.b16 %v130
    %v1002 = vunpack.c.l.b16 %v131
    %v1003 = vunpack.c.h.b16 %v131
    %v1004 = vunpack.c.l.b16 %v132
    %v1005 = vunpack.c.h.b16 %v132
    %v1006 = vunpack.c.l.b16 %v133
    %v1007 = vunpack.c.h.b16 %v133
    %v1008 = vunpack.c.l.b16 %v134
    %v1009 = vunpack.c.h.b16 %v134
    %v1010 = vunpack.c.l.b16 %v135
    %v1011 = vunpack.c.h.b16 %v135
    %v1012 = vunpack.c.l.b16 %v136
    %v1013 = vunpack.c.h.b16 %v136
    %v1014 = vunpack.c.l.b16 %v137
    %v1015 = vunpack.c.h.b16 %v137
    %v1016 = vunpack.c.l.b16 %v138
    %v1017 = vunpack.c.h.b16 %v138
    %v1018 = vunpack.c.l.b16 %v139
    %v1019 = vunpack.c.h.b16 %v139
    %v1020 = vunpack.c.l.b16 %v140
    %v1021 = vunpack.c.h.b16 %v140
    %v1022 = vunpack.c.l.b16 %v141
    %v1023 = vunpack.c.h.b16 %v141
    %v1024 = vunpack.c.l.b16 %v142
    %v1025 = vunpack.c.h.b16 %v142
    %v1026 = vunpack.c.l.b16 %v143
    %v1027 = vunpack.c.h.b16 %v143
    %v1028 = vunpack.c.l.b16 %v144
    %v1029 = vunpack.c.h.b16 %v144
    %v1030 = vunpack.c.l.b16 %v145
    %v1031 = vunpack.c.h.b16 %v145
    %v1032 = vunpack.c.l.b16 %v146
    %v1033 = vunpack.c.h.b16 %v146
    %v1034 = vunpack.c.l.b16 %v147
    %v1035 = vunpack.c.h.b16 %v147
    %v1036 = vunpack.c.l.b16 %v148
    %v1037 = vunpack.c.h.b16 %v148
    %v1038 = vunpack.c.l.b16 %v149
    %v1039 = vunpack.c.h.b16 %v149
    %v1040 = vunpack.c.l.b16 %v150
    %v1041 = vunpack.c.h.b16 %v150
    %v1042 = vunpack.c.l.b16 %v151
    %v1043 = vunpack.c.h.b16 %v151
    %v1044 = vunpack.c.l.b16 %v152
    %v1045 = vunpack.c.h.b16 %v152
    %v1046 = vunpack.c.l.b16 %v153
    %v1047 = vunpack.c.h.b16 %v153
    %v1048 = vunpack.c.l.b16 %v154
    %v1049 = vunpack.c.h.b16 %v154
    %v1050 = vunpack.c.l.b16 %v155
    %v1051 = vunpack.c.h.b16 %v155
    %v1052 = vunpack.c.l.b16 %v156
    %v1053 = vunpack.c.h.b16 %v156
    %v1054 = vunpack.c.l.b16 %v157
    %v1055 = vunpack.c.h.b16 %v157
    %v1056 = vunpack.c.l.b16 %v158
    %v1057 = vunpack.c.h.b16 %v158
    %v1058 = vunpack.c.l.b16 %v159
    %v1059 = vunpack.c.h.b16 %v159
    %v1060 = vunpack.c.l.b16 %v160
    %v1061 = vunpack.c.h.b16 %v160
    %v1062 = vunpack.c.l.b16 %v161
    %v1063 = vunpack.c.h.b16 %v161
    %v1064 = vunpack.c.l.b16 %v162
    %v1065 = vunpack.c.h.b16 %v162
    %v1066 = vunpack.c.l.b16 %v163
    %v1067 = vunpack.c.h.b16 %v163
    %v1068 = vunpack.c.l.b16 %v164
    %v1069 = vunpack.c.h.b16 %v164
    %v1070 = vunpack.c.l.b16 %v165
    %v1071 = vunpack.c.h.b16 %v165
    %v1072 = vunpack.c.l.b16 %v166
    %v1073 = vunpack.c.h.b16 %v166
    %v1074 = vunpack.c.l.b16 %v167
    %v1075 = vunpack.c.h.b16 %v167
    %v1076 = vunpack.c.l.b16 %v168
    %v1077 = vunpack.c.h.b16 %v168
    %v1078 = vunpack.c.l.b16 %v169
    %v1079 = vunpack.c.h.b16 %v169
    %v1080 = vunpack.c.l.b16 %v170
    %v1081 = vunpack.c.h.b16 %v170
    %v1082 = vunpack.c.l.b16 %v171
    %v1083 = vunpack.c.h.b16 %v171
    %v1084 = vunpack.c.l.b16 %v172
    %v1085 = vunpack.c.h.b16 %v172
    %v1086 = vunpack.c.l.b16 %v173
    %v1087 = vunpack.c.h.b16 %v173
    %v1088 = vunpack.c.l.b16 %v174
    %v1089 = vunpack.c.h.b16 %v174
    %v1090 = vunpack.c.l.b16 %v175
    %v1091 = vunpack.c.h.b16 %v175
    %v1092 = vunpack.c.l.b16 %v176
    %v1093 = vunpack.c.h.b16 %v176
    %v1094 = vunpack.c.l.b16 %v177
    %v1095 = vunpack.c.h.b16 %v177
    %v1096 = vunpack.c.l.b16 %v178
    %v1097 = vunpack.c.h.b16 %v178
    %v1098 = vunpack.c.l.b16 %v179
    %v1099 = vunpack.c.h.b16 %v179
    %v1100 = vunpack.c.l.b16 %v180
    %v1101 = vunpack.c.h.b16 %v180
    %v1102 = vunpack.c.l.b16 %v181
    %v1103 = vunpack.c.h.b16 %v181
    %v1104 = vunpack.c.l.b16 %v182
    %v1105 = vunpack.c.h.b16 %v182
    %v1106 = vunpack.c.l.b16 %v183
    %v1107 = vunpack.c.h.b16 %v183
    %v1108 = vunpack.c.l.b16 %v184
    %v1109 = vunpack.c.h.b16 %v184
    %v1110 = vunpack.c.l.b16 %v185
    %v1111 = vunpack.c.h.b16 %v185
    %v1112 = vunpack.c.l.b16 %v186
    %v1113 = vunpack.c.h.b16 %v186
    %v1114 = vunpack.c.l.b16 %v187
    %v1115 = vunpack.c.h.b16 %v187
    %v1116 = vunpack.c.l.b16 %v188
    %v1117 = vunpack.c.h.b16 %v188
    %v1118 = vunpack.c.l.b16 %v189
    %v1119 = vunpack.c.h.b16 %v189
    %v1120 = vunpack.c.l.b16 %v190
    %v1121 = vunpack.c.h.b16 %v190
    %v1122 = vunpack.c.l.b16 %v191
    %v1123 = vunpack.c.h.b16 %v191
    %v1124 = vunpack.c.l.b16 %v192
    %v1125 = vunpack.c.h.b16 %v192
    %v1126 = vunpack.c.l.b16 %v193
    %v1127 = vunpack.c.h.b16 %v193
    %v1128 = vunpack.c.l.b16 %v194
    %v1129 = vunpack.c.h.b16 %v194
    %v1130 = vunpack.c.l.b16 %v195
    %v1131 = vunpack.c.h.b16 %v195
    %v1132 = vunpack.c.l.b16 %v196
    %v1133 = vunpack.c.h.b16 %v196
    %v1134 = vunpack.c.l.b16 %v197
    %v1135 = vunpack.c.h.b16 %v197
    %v1136 = vunpack.c.l.b16 %v198
    %v1137 = vunpack.c.h.b16 %v198
    %v1138 = vunpack.c.l.b16 %v199
    %v1139 = vunpack.c.h.b16 %v199
    %v1140 = vunpack.c.l.b16 %v200
    %v1141 = vunpack.c.h.b16 %v200
    %v1142 = vunpack.c.l.b16 %v201
    %v1143 = vunpack.c.h.b16 %v201
    %v1144 = vunpack.c.l.b16 %v202
    %v1145 = vunpack.c.h.b16 %v202
    %v1146 = vunpack.c.l.b16 %v203
    %v1147 = vunpack.c.h.b16 %v203
    %v1148 = vunpack.c.l.b16 %v204
    %v1149 = vunpack.c.h.b16 %v204
    %v1150 = vunpack.c.l.b16 %v205
    %v1151 = vunpack.c.h.b16 %v205
    %v1152 = vunpack.c.l.b16 %v206
    %v1153 = vunpack.c.h.b16 %v206
    %v1154 = vunpack.c.l.b16 %v207
    %v1155 = vunpack.c.h.b16 %v207
    %v1156 = vunpack.c.l.b16 %v208
    %v1157 = vunpack.c.h.b16 %v208
    %v1158 = vunpack.c.l.b16 %v209
    %v1159 = vunpack.c.h.b16 %v209
    %v1160 = vunpack.c.l.b16 %v210
    %v1161 = vunpack.c.h.b16 %v210
    %v1162 = vunpack.c.l.b16 %v211
    %v1163 = vunpack.c.h.b16 %v211
    %v1164 = vunpack.c.l.b16 %v212
    %v1165 = vunpack.c.h.b16 %v212
    %v1166 = vunpack.c.l.b16 %v213
    %v1167 = vunpack.c.h.b16 %v213
    %v1168 = vunpack.c.l.b16 %v214
    %v1169 = vunpack.c.h.b16 %v214
    %v1170 = vunpack.c.l.b16 %v215
    %v1171 = vunpack.c.h.b16 %v215
    %v1172 = vunpack.c.l.b16 %v216
    %v1173 = vunpack.c.h.b16 %v216
    %v1174 = vunpack.c.l.b16 %v217
    %v1175 = vunpack.c.h.b16 %v217
    %v1176 = vunpack.c.l.b16 %v218
    %v1177 = vunpack.c.h.b16 %v218
    %v1178 = vunpack.c.l.b16 %v219
    %v1179 = vunpack.c.h.b16 %v219
    %v1180 = vunpack.c.l.b16 %v220
    %v1181 = vunpack.c.h.b16 %v220
    %v1182 = vunpack.c.l.b16 %v221
    %v1183 = vunpack.c.h.b16 %v221
    %v1184 = vunpack.c.l.b16 %v222
    %v1185 = vunpack.c.h.b16 %v222
    %v1186 = vunpack.c.l.b16 %v223
    %v1187 = vunpack.c.h.b16 %v223
    %v1188 = vunpack.c.l.b16 %v224
    %v1189 = vunpack.c.h.b16 %v224
    %v1190 = vunpack.c.l.b16 %v225
    %v1191 = vunpack.c.h.b16 %v225
    %v1192 = vunpack.c.l.b16 %v226
    %v1193 = vunpack.c.h.b16 %v226
    %v1194 = vunpack.c.l.b16 %v227
    %v1195 = vunpack.c.h.b16 %v227
    %v1196 = vunpack.c.l.b16 %v228
    %v1197 = vunpack.c.h.b16 %v228
    %v1198 = vunpack.c.l.b16 %v229
    %v1199 = vunpack.c.h.b16 %v229
    %v1200 = vunpack.c.l.b16 %v230
    %v1201 = vunpack.c.h.b16 %v230
    %v1202 = vunpack.c.l.b16 %v231
    %v1203 = vunpack.c.h.b16 %v231
    %v1204 = vunpack.c.l.b16 %v232
    %v1205 = vunpack.c.h.b16 %v232
    %v1206 = vunpack.c.l.b16 %v233
    %v1207 = vunpack.c.h.b16 %v233
    %v1208 = vunpack.c.l.b16 %v234
    %v1209 = vunpack.c.h.b16 %v234
    %v1210 = vunpack.c.l.b16 %v235
    %v1211 = vunpack.c.h.b16 %v235
    %v1212 = vunpack.c.l.b16 %v236
    %v1213 = vunpack.c.h.b16 %v236
    %v1214 = vunpack.c.l.b16 %v237
    %v1215 = vunpack.c.h.b16 %v237
    %v1216 = vunpack.c.l.b16 %v238
    %v1217 = vunpack.c.h.b16 %v238
    %v1218 = vunpack.c.l.b16 %v239
    %v1219 = vunpack.c.h.b16 %v239
    %v1220 = vunpack.c.l.b16 %v240
    %v1221 = vunpack.c.h.b16 %v240
    %v1222 = vunpack.c.l.b16 %v241
    %v1223 = vunpack.c.h.b16 %v241
    %v1224 = vunpack.c.l.b16 %v242
    %v1225 = vunpack.c.h.b16 %v242
    %v1226 = vunpack.c.l.b16 %v243
    %v1227 = vunpack.c.h.b16 %v243
    %v1228 = vunpack.c.l.b16 %v244
    %v1229 = vunpack.c.h.b16 %v244
    %v1230 = vunpack.c.l.b16 %v245
    %v1231 = vunpack.c.h.b16 %v245
    %v1232 = vunpack.c.l.b16 %v246
    %v1233 = vunpack.c.h.b16 %v246
    %v1234 = vunpack.c.l.b16 %v247
    %v1235 = vunpack.c.h.b16 %v247
    %v1236 = vunpack.c.l.b16 %v248
    %v1237 = vunpack.c.h.b16 %v248
    %v1238 = vunpack.c.l.b16 %v249
    %v1239 = vunpack.c.h.b16 %v249
    %v1240 = vunpack.c.l.b16 %v250
    %v1241 = vunpack.c.h.b16 %v250
    %v1242 = vunpack.c.l.b16 %v251
    %v1243 = vunpack.c.h.b16 %v251
    %v1244 = vunpack.c.l.b16 %v252
    %v1245 = vunpack.c.h.b16 %v252
    %v1246 = vunpack.c.l.b16 %v253
    %v1247 = vunpack.c.h.b16 %v253
    %v1248 = vunpack.c.l.b16 %v254
    %v1249 = vunpack.c.h.b16 %v254
    %v1250 = vunpack.c.l.b16 %v255
    %v1251 = vunpack.c.h.b16 %v255
    %v1252 = vunpack.c.l.b16 %v256
    %v1253 = vunpack.c.h.b16 %v256
    %v1254 = vunpack.c.l.b16 %v257
    %v1255 = vunpack.c.h.b16 %v257
    %v1256 = vunpack.c.l.b16 %v258
    %v1257 = vunpack.c.h.b16 %v258
    %v1258 = vunpack.c.l.b16 %v259
    %v1259 = vunpack.c.h.b16 %v259
    %v1260 = vunpack.c.l.b16 %v260
    %v1261 = vunpack.c.h.b16 %v260
    %v1262 = vunpack.c.l.b16 %v261
    %v1263 = vunpack.c.h.b16 %v261
    %v1264 = vunpack.c.l.b16 %v262
    %v1265 = vunpack.c.h.b16 %v262
    %v1266 = vunpack.c.l.b16 %v263
    %v1267 = vunpack.c.h.b16 %v263
    %v1268 = vunpack.c.l.b16 %v264
    %v1269 = vunpack.c.h.b16 %v264
    %v1270 = vunpack.c.l.b16 %v265
    %v1271 = vunpack.c.h.b16 %v265
    %v1272 = vunpack.c.l.b16 %v266
    %v1273 = vunpack.c.h.b16 %v266
    %v1274 = vunpack.c.l.b16 %v267
    %v1275 = vunpack.c.h.b16 %v267
    %v1276 = vunpack.c.l.b16 %v268
    %v1277 = vunpack.c.h.b16 %v268
    %v1278 = vunpack.c.l.b16 %v269
    %v1279 = vunpack.c.h.b16 %v269
    %v1280 = vunpack.c.l.b16 %v270
    %v1281 = vunpack.c.h.b16 %v270
    %v1282 = vunpack.c.l.b16 %v271
    %v1283 = vunpack.c.h.b16 %v271
    %v1284 = vunpack.c.l.b16 %v272
    %v1285 = vunpack.c.h.b16 %v272
    %v1286 = vunpack.c.l.b16 %v273
    %v1287 = vunpack.c.h.b16 %v273
    %v1288 = vunpack.c.l.b16 %v274
    %v1289 = vunpack.c.h.b16 %v274
    %v1290 = vunpack.c.l.b16 %v275
    %v1291 = vunpack.c.h.b16 %v275
    %v1292 = vunpack.c.l.b16 %v276
    %v1293 = vunpack.c.h.b16 %v276
    %v1294 = vunpack.c.l.b16 %v277
    %v1295 = vunpack.c.h.b16 %v277
    %v1296 = vunpack.c.l.b16 %v278
    %v1297 = vunpack.c.h.b16 %v278
    %v1298 = vunpack.c.l.b16 %v279
    %v1299 = vunpack.c.h.b16 %v279
    %v1300 = vunpack.c.l.b16 %v280
    %v1301 = vunpack.c.h.b16 %v280
    %v1302 = vunpack.c.l.b16 %v281
    %v1303 = vunpack.c.h.b16 %v281
    %v1304 = vunpack.c.l.b16 %v282
    %v1305 = vunpack.c.h.b16 %v282
    %v1306 = vunpack.c.l.b16 %v283
    %v1307 = vunpack.c.h.b16 %v283
    %v1308 = vunpack.c.l.b16 %v284
    %v1309 = vunpack.c.h.b16 %v284
    %v1310 = vunpack.c.l.b16 %v285
    %v1311 = vunpack.c.h.b16 %v285
    %v1312 = vunpack.c.l.b16 %v286
    %v1313 = vunpack.c.h.b16 %v286
    %v1314 = vunpack.c.l.b16 %v287
    %v1315 = vunpack.c.h.b16 %v287
    %v1316 = vunpack.c.l.b16 %v288
    %v1317 = vunpack.c.h.b16 %v288
    %v1318 = vunpack.c.l.b16 %v289
    %v1319 = vunpack.c.h.b16 %v289
    %v1320 = vunpack.c.l.b16 %v290
    %v1321 = vunpack.c.h.b16 %v290
    %v1322 = vunpack.c.l.b16 %v291
    %v1323 = vunpack.c.h.b16 %v291
    %v1324 = vunpack.c.l.b16 %v292
    %v1325 = vunpack.c.h.b16 %v292
    %v1326 = vunpack.c.l.b16 %v293
    %v1327 = vunpack.c.h.b16 %v293
    %v1328 = vunpack.c.l.b16 %v294
    %v1329 = vunpack.c.h.b16 %v294
    %v1330 = vunpack.c.l.b16 %v295
    %v1331 = vunpack.c.h.b16 %v295
    %v1332 = vunpack.c.l.b16 %v296
    %v1333 = vunpack.c.h.b16 %v296
    %v1334 = vunpack.c.l.b16 %v297
    %v1335 = vunpack.c.h.b16 %v297
    %v1336 = vunpack.c.l.b16 %v298
    %v1337 = vunpack.c.h.b16 %v298
    %v1338 = vunpack.c.l.b16 %v299
    %v1339 = vunpack.c.h.b16 %v299
    %v1340 = vunpack.c.l.b16 %v300
    %v1341 = vunpack.c.h.b16 %v300
    %v1342 = vunpack.c.l.b16 %v301
    %v1343 = vunpack.c.h.b16 %v301
    %v1344 = vunpack.c.l.b16 %v302
    %v1345 = vunpack.c.h.b16 %v302
    %v1346 = vunpack.c.l.b16 %v303
    %v1347 = vunpack.c.h.b16 %v303
    %v1348 = vunpack.c.l.b16 %v304
    %v1349 = vunpack.c.h.b16 %v304
    %v1350 = vunpack.c.l.b16 %v305
    %v1351 = vunpack.c.h.b16 %v305
    %v1352 = vunpack.c.l.b16 %v306
    %v1353 = vunpack.c.h.b16 %v306
    %v1354 = vunpack.c.l.b16 %v307
    %v1355 = vunpack.c.h.b16 %v307
    %v1356 = vunpack.c.l.b16 %v308
    %v1357 = vunpack.c.h.b16 %v308
    %v1358 = vunpack.c.l.b16 %v309
    %v1359 = vunpack.c.h.b16 %v309
    %v1360 = vunpack.c.l.b16 %v310
    %v1361 = vunpack.c.h.b16 %v310
    %v1362 = vunpack.c.l.b16 %v311
    %v1363 = vunpack.c.h.b16 %v311
    %v1364 = vunpack.c.l.b16 %v312
    %v1365 = vunpack.c.h.b16 %v312
    %v1366 = vunpack.c.l.b16 %v313
    %v1367 = vunpack.c.h.b16 %v313
    %v1368 = vunpack.c.l.b16 %v314
    %v1369 = vunpack.c.h.b16 %v314
    %v1370 = vunpack.c.l.b16 %v315
    %v1371 = vunpack.c.h.b16 %v315
    %v1372 = vunpack.c.l.b16 %v316
    %v1373 = vunpack.c.h.b16 %v316
    %v1374 = vunpack.c.l.b16 %v317
    %v1375 = vunpack.c.h.b16 %v317
    %v1376 = vunpack.c.l.b16 %v318
    %v1377 = vunpack.c.h.b16 %v318
    %v1378 = vunpack.c.l.b16 %v319
    %v1379 = vunpack.c.h.b16 %v319
    %v1380 = vunpack.c.l.b16 %v320
    %v1381 = vunpack.c.h.b16 %v320
    %v1382 = vunpack.c.l.b16 %v321
    %v1383 = vunpack.c.h.b16 %v321
    %v1384 = vunpack.c.l.b16 %v322
    %v1385 = vunpack.c.h.b16 %v322
    %v1386 = vunpack.c.l.b16 %v323
    %v1387 = vunpack.c.h.b16 %v323
    %v1388 = vunpack.c.l.b16 %v324
    %v1389 = vunpack.c.h.b16 %v324
    %v1390 = vunpack.c.l.b16 %v325
    %v1391 = vunpack.c.h.b16 %v325
    %v1392 = vunpack.c.l.b16 %v326
    %v1393 = vunpack.c.h.b16 %v326
    %v1394 = vunpack.c.l.b16 %v327
    %v1395 = vunpack.c.h.b16 %v327
    %v1396 = vunpack.c.l.b16 %v328
    %v1397 = vunpack.c.h.b16 %v328
    %v1398 = vunpack.c.l.b16 %v329
    %v1399 = vunpack.c.h.b16 %v329
    %v1400 = vunpack.c.l.b16 %v330
    %v1401 = vunpack.c.h.b16 %v330
    %v1402 = vunpack.c.l.b16 %v331
    %v1403 = vunpack.c.h.b16 %v331
    %v1404 = vunpack.c.l.b16 %v332
    %v1405 = vunpack.c.h.b16 %v332
    %v1406 = vunpack.c.l.b16 %v333
    %v1407 = vunpack.c.h.b16 %v333
    %v1408 = vunpack.c.l.b16 %v334
    %v1409 = vunpack.c.h.b16 %v334
    %v1410 = vunpack.c.l.b16 %v335
    %v1411 = vunpack.c.h.b16 %v335
    %v1412 = vunpack.c.l.b16 %v336
    %v1413 = vunpack.c.h.b16 %v336
    %v1414 = vunpack.c.l.b16 %v337
    %v1415 = vunpack.c.h.b16 %v337
    %v1416 = vunpack.c.l.b16 %v338
    %v1417 = vunpack.c.h.b16 %v338
    %v1418 = vunpack.c.l.b16 %v339
    %v1419 = vunpack.c.h.b16 %v339
    %v1420 = vunpack.c.l.b16 %v340
    %v1421 = vunpack.c.h.b16 %v340
    %v1422 = vunpack.c.l.b16 %v341
    %v1423 = vunpack.c.h.b16 %v341
    %v1424 = vunpack.c.l.b16 %v342
    %v1425 = vunpack.c.h.b16 %v342
    %v1426 = vunpack.c.l.b16 %v343
    %v1427 = vunpack.c.h.b16 %v343
    %v1428 = vunpack.c.l.b16 %v344
    %v1429 = vunpack.c.h.b16 %v344
    %v1430 = vunpack.c.l.b16 %v345
    %v1431 = vunpack.c.h.b16 %v345
    %v1432 = vunpack.c.l.b16 %v346
    %v1433 = vunpack.c.h.b16 %v346
    %v1434 = vunpack.c.l.b16 %v347
    %v1435 = vunpack.c.h.b16 %v347
    %v1436 = vunpack.c.l.b16 %v348
    %v1437 = vunpack.c.h.b16 %v348
    %v1438 = vunpack.c.l.b16 %v349
    %v1439 = vunpack.c.h.b16 %v349
    %v1440 = vunpack.c.l.b16 %v350
    %v1441 = vunpack.c.h.b16 %v350
    %v1442 = vunpack.c.l.b16 %v351
    %v1443 = vunpack.c.h.b16 %v351
    %v1444 = vunpack.c.l.b16 %v352
    %v1445 = vunpack.c.h.b16 %v352
    %v1446 = vunpack.c.l.b16 %v353
    %v1447 = vunpack.c.h.b16 %v353
    %v1448 = vunpack.c.l.b16 %v354
    %v1449 = vunpack.c.h.b16 %v354
    %v1450 = vunpack.c.l.b16 %v355
    %v1451 = vunpack.c.h.b16 %v355
    %v1452 = vunpack.c.l.b16 %v356
    %v1453 = vunpack.c.h.b16 %v356
    %v1454 = vunpack.c.l.b16 %v357
    %v1455 = vunpack.c.h.b16 %v357
    %v1456 = vunpack.c.l.b16 %v358
    %v1457 = vunpack.c.h.b16 %v358
    %v1458 = vunpack.c.l.b16 %v359
    %v1459 = vunpack.c.h.b16 %v359
    %v1460 = vunpack.c.l.b16 %v360
    %v1461 = vunpack.c.h.b16 %v360
    %v1462 = vunpack.c.l.b16 %v361
    %v1463 = vunpack.c.h.b16 %v361
    %v1464 = vunpack.c.l.b16 %v362
    %v1465 = vunpack.c.h.b16 %v362
    %v1466 = vunpack.c.l.b16 %v363
    %v1467 = vunpack.c.h.b16 %v363
    %v1468 = vunpack.c.l.b16 %v364
    %v1469 = vunpack.c.h.b16 %v364
    %v1470 = vunpack.c.l.b16 %v365
    %v1471 = vunpack.c.h.b16 %v365
    %v1472 = vunpack.c.l.b16 %v366
    %v1473 = vunpack.c.h.b16 %v366
    %v1474 = vunpack.c.l.b16 %v367
    %v1475 = vunpack.c.h.b16 %v367
    %v1476 = vunpack.c.l.b16 %v368
    %v1477 = vunpack.c.h.b16 %v368
    %v1478 = vunpack.c.l.b16 %v369
    %v1479 = vunpack.c.h.b16 %v369
    %v1480 = vunpack.c.l.b16 %v370
    %v1481 = vunpack.c.h.b16 %v370
    %v1482 = vunpack.c.l.b16 %v371
    %v1483 = vunpack.c.h.b16 %v371
    %v1484 = vunpack.c.l.b16 %v372
    %v1485 = vunpack.c.h.b16 %v372
    %v1486 = vunpack.c.l.b16 %v373
    %v1487 = vunpack.c.h.b16 %v373
    %v1488 = vunpack.c.l.b16 %v374
    %v1489 = vunpack.c.h.b16 %v374
    %v1490 = vunpack.c.l.b16 %v375
    %v1491 = vunpack.c.h.b16 %v375
    %v1492 = vunpack.c.l.b16 %v376
    %v1493 = vunpack.c.h.b16 %v376
    %v1494 = vunpack.c.l.b16 %v377
    %v1495 = vunpack.c.h.b16 %v377
    %v1496 = vunpack.c.l.b16 %v378
    %v1497 = vunpack.c.h.b16 %v378
    %v1498 = vunpack.c.l.b16 %v379
    %v1499 = vunpack.c.h.b16 %v379
    %v1500 = vunpack.c.l.b16 %v380
    %v1501 = vunpack.c.h.b16 %v380
    %v1502 = vunpack.c.l.b16 %v381
    %v1503 = vunpack.c.h.b16 %v381
    %v1504 = vunpack.c.l.b16 %v382
    %v1505 = vunpack.c.h.b16 %v382
    %v1506 = vunpack.c.l.b16 %v383
    %v1507 = vunpack.c.h.b16 %v383
    %v1508 = vunpack.c.l.b16 %v384
    %v1509 = vunpack.c.h.b16 %v384
    %v1510 = vunpack.c.l.b16 %v385
    %v1511 = vunpack.c.h.b16 %v385
    %v1512 = vunpack.c.l.b16 %v386
    %v1513 = vunpack.c.h.b16 %v386
    %v1514 = vunpack.c.l.b16 %v387
    %v1515 = vunpack.c.h.b16 %v387
    %v1516 = vunpack.c.l.b16 %v388
    %v1517 = vunpack.c.h.b16 %v388
    %v1518 = vunpack.c.l.b16 %v389
    %v1519 = vunpack.c.h.b16 %v389
    %v1520 = vunpack.c.l.b16 %v390
    %v1521 = vunpack.c.h.b16 %v390
    %v1522 = vunpack.c.l.b16 %v391
    %v1523 = vunpack.c.h.b16 %v391
    %v1524 = vunpack.c.l.b16 %v392
    %v1525 = vunpack.c.h.b16 %v392
    %v1526 = vunpack.c.l.b16 %v393
    %v1527 = vunpack.c.h.b16 %v393
    %v1528 = vunpack.c.l.b16 %v394
    %v1529 = vunpack.c.h.b16 %v394
    %v1530 = vunpack.c.l.b16 %v395
    %v1531 = vunpack.c.h.b16 %v395
    %v1532 = vunpack.c.l.b16 %v396
    %v1533 = vunpack.c.h.b16 %v396
    %v1534 = vunpack.c.l.b16 %v397
    %v1535 = vunpack.c.h.b16 %v397
    %v1536 = vunpack.c.l.b16 %v398
    %v1537 = vunpack.c.h.b16 %v398
    %v1538 = vunpack.c.l.b16 %v399
    %v1539 = vunpack.c.h.b16 %v399
    %v1540 = vunpack.c.l.b16 %v400
    %v1541 = vunpack.c.h.b16 %v400
    %v1542 = vunpack.c.l.b16 %v401
    %v1543 = vunpack.c.h.b16 %v401
    %v1544 = vunpack.c.l.b16 %v402
    %v1545 = vunpack.c.h.b16 %v402
    %v1546 = vunpack.c.l.b16 %v403
    %v1547 = vunpack.c.h.b16 %v403
    %v1548 = vunpack.c.l.b16 %v404
    %v1549 = vunpack.c.h.b16 %v404
    %v1550 = vunpack.c.l.b16 %v405
    %v1551 = vunpack.c.h.b16 %v405
    %v1552 = vunpack.c.l.b16 %v406
    %v1553 = vunpack.c.h.b16 %v406
    %v1554 = vunpack.c.l.b16 %v407
    %v1555 = vunpack.c.h.b16 %v407
    %v1556 = vunpack.c.l.b16 %v408
    %v1557 = vunpack.c.h.b16 %v408
    %v1558 = vunpack.c.l.b16 %v409
    %v1559 = vunpack.c.h.b16 %v409
    %v1560 = vunpack.c.l.b16 %v410
    %v1561 = vunpack.c.h.b16 %v410
    %v1562 = vunpack.c.l.b16 %v411
    %v1563 = vunpack.c.h.b16 %v411
    %v1564 = vunpack.c.l.b16 %v412
    %v1565 = vunpack.c.h.b16 %v412
    %v1566 = vunpack.c.l.b16 %v413
    %v1567 = vunpack.c.h.b16 %v413
    %v1568 = vunpack.c.l.b16 %v414
    %v1569 = vunpack.c.h.b16 %v414
    %v1570 = vunpack.c.l.b16 %v415
    %v1571 = vunpack.c.h.b16 %v415
    %v1572 = vunpack.c.l.b16 %v416
    %v1573 = vunpack.c.h.b16 %v416
    %v1574 = vunpack.c.l.b16 %v417
    %v1575 = vunpack.c.h.b16 %v417
    %v1576 = vunpack.c.l.b16 %v418
    %v1577 = vunpack.c.h.b16 %v418
    %v1578 = vunpack.c.l.b16 %v419
    %v1579 = vunpack.c.h.b16 %v419
    %v1580 = vunpack.c.l.b16 %v420
    %v1581 = vunpack.c.h.b16 %v420
    %v1582 = vunpack.c.l.b16 %v421
    %v1583 = vunpack.c.h.b16 %v421
    %v1584 = vunpack.c.l.b16 %v422
    %v1585 = vunpack.c.h.b16 %v422
    %v1586 = vunpack.c.l.b16 %v423
    %v1587 = vunpack.c.h.b16 %v423
    %v1588 = vunpack.c.l.b16 %v424
    %v1589 = vunpack.c.h.b16 %v424
    %v1590 = vunpack.c.l.b16 %v425
    %v1591 = vunpack.c.h.b16 %v425
    %v1592 = vunpack.c.l.b16 %v426
    %v1593 = vunpack.c.h.b16 %v426
    %v1594 = vunpack.c.l.b16 %v427
    %v1595 = vunpack.c.h.b16 %v427
    %v1596 = vunpack.c.l.b16 %v428
    %v1597 = vunpack.c.h.b16 %v428
    %v1598 = vunpack.c.l.b16 %v429
    %v1599 = vunpack.c.h.b16 %v429
    %v1600 = vunpack.c.l.b16 %v430
    %v1601 = vunpack.c.h.b16 %v430
    %v1602 = vunpack.c.l.b16 %v431
    %v1603 = vunpack.c.h.b16 %v431
    %v1604 = vunpack.c.l.b16 %v432
    %v1605 = vunpack.c.h.b16 %v432
    %v1606 = vunpack.c.l.b16 %v433
    %v1607 = vunpack.c.h.b16 %v433
    %v1608 = vunpack.c.l.b16 %v434
    %v1609 = vunpack.c.h.b16 %v434
    %v1610 = vunpack.c.l.b16 %v435
    %v1611 = vunpack.c.h.b16 %v435
    %v1612 = vunpack.c.l.b16 %v436
    %v1613 = vunpack.c.h.b16 %v436
    %v1614 = vunpack.c.l.b16 %v437
    %v1615 = vunpack.c.h.b16 %v437
    %v1616 = vunpack.c.l.b16 %v438
    %v1617 = vunpack.c.h.b16 %v438
    %v1618 = vunpack.c.l.b16 %v439
    %v1619 = vunpack.c.h.b16 %v439
    %v1620 = vunpack.c.l.b16 %v440
    %v1621 = vunpack.c.h.b16 %v440
    %v1622 = vunpack.c.l.b16 %v441
    %v1623 = vunpack.c.h.b16 %v441
    %v1624 = vunpack.c.l.b16 %v442
    %v1625 = vunpack.c.h.b16 %v442
    %v1626 = vunpack.c.l.b16 %v443
    %v1627 = vunpack.c.h.b16 %v443
    %v1628 = vunpack.c.l.b16 %v444
    %v1629 = vunpack.c.h.b16 %v444
    %v1630 = vunpack.c.l.b16 %v445
    %v1631 = vunpack.c.h.b16 %v445
    %v1632 = vunpack.c.l.b16 %v446
    %v1633 = vunpack.c.h.b16 %v446
    %v1634 = vunpack.c.l.b16 %v447
    %v1635 = vunpack.c.h.b16 %v447
    %v1636 = vunpack.c.l.b16 %v448
    %v1637 = vunpack.c.h.b16 %v448
    %v1638 = vunpack.c.l.b16 %v449
    %v1639 = vunpack.c.h.b16 %v449
    %v1640 = vunpack.c.l.b16 %v450
    %v1641 = vunpack.c.h.b16 %v450
    %v1642 = vunpack.c.l.b16 %v451
    %v1643 = vunpack.c.h.b16 %v451
    %v1644 = vunpack.c.l.b16 %v452
    %v1645 = vunpack.c.h.b16 %v452
    %v1646 = vunpack.c.l.b16 %v453
    %v1647 = vunpack.c.h.b16 %v453
    %v1648 = vunpack.c.l.b16 %v454
    %v1649 = vunpack.c.h.b16 %v454
    %v1650 = vunpack.c.l.b16 %v455
    %v1651 = vunpack.c.h.b16 %v455
    %v1652 = vunpack.c.l.b16 %v456
    %v1653 = vunpack.c.h.b16 %v456
    %v1654 = vunpack.c.l.b16 %v457
    %v1655 = vunpack.c.h.b16 %v457
    %v1656 = vunpack.c.l.b16 %v458
    %v1657 = vunpack.c.h.b16 %v458
    %v1658 = vunpack.c.l.b16 %v459
    %v1659 = vunpack.c.h.b16 %v459
    %v1660 = vunpack.c.l.b16 %v460
    %v1661 = vunpack.c.h.b16 %v460
    %v1662 = vunpack.c.l.b16 %v461
    %v1663 = vunpack.c.h.b16 %v461
    %v1664 = vunpack.c.l.b16 %v462
    %v1665 = vunpack.c.h.b16 %v462
    %v1666 = vunpack.c.l.b16 %v463
    %v1667 = vunpack.c.h.b16 %v463
    %v1668 = vunpack.c.l.b16 %v464
    %v1669 = vunpack.c.h.b16 %v464
    %v1670 = vunpack.c.l.b16 %v465
    %v1671 = vunpack.c.h.b16 %v465
    %v1672 = vunpack.c.l.b16 %v466
    %v1673 = vunpack.c.h.b16 %v466
    %v1674 = vunpack.c.l.b16 %v467
    %v1675 = vunpack.c.h.b16 %v467
    %v1676 = vunpack.c.l.b16 %v468
    %v1677 = vunpack.c.h.b16 %v468
    %v1678 = vunpack.c.l.b16 %v469
    %v1679 = vunpack.c.h.b16 %v469
    %v1680 = vunpack.c.l.b16 %v470
    %v1681 = vunpack.c.h.b16 %v470
    %v1682 = vunpack.c.l.b16 %v471
    %v1683 = vunpack.c.h.b16 %v471
    %v1684 = vunpack.c.l.b16 %v472
    %v1685 = vunpack.c.h.b16 %v472
    %v1686 = vunpack.c.l.b16 %v473
    %v1687 = vunpack.c.h.b16 %v473
    %v1688 = vunpack.c.l.b16 %v474
    %v1689 = vunpack.c.h.b16 %v474
    %v1690 = vunpack.c.l.b16 %v475
    %v1691 = vunpack.c.h.b16 %v475
    %v1692 = vunpack.c.l.b16 %v476
    %v1693 = vunpack.c.h.b16 %v476
    %v1694 = vunpack.c.l.b16 %v477
    %v1695 = vunpack.c.h.b16 %v477
    %v1696 = vpack.c.b16 %v920, %v912
    %v1697 = vpack.c.b16 %v921, %v913
    %v1698 = vpack.c.b16 %v922, %v914
    %v1699 = vpack.c.b16 %v923, %v915
    %v1700 = vpack.c.b16 %v924, %v916
    %v1701 = vpack.c.b16 %v925, %v917
    %v1702 = vpack.c.b16 %v926, %v918
    %v1703 = vpack.c.b16 %v927, %v919
    %v1704 = vpack.c.b16 %v936, %v928
    %v1705 = vpack.c.b16 %v937, %v929
    %v1706 = vpack.c.b16 %v938, %v930
    %v1707 = vpack.c.b16 %v939, %v931
    %v1708 = vpack.c.b16 %v940, %v932
    %v1709 = vpack.c.b16 %v941, %v933
    %v1710 = vpack.c.b16 %v942, %v934
    %v1711 = vpack.c.b16 %v943, %v935
    %v1712 = vpack.c.b16 %v952, %v944
    %v1713 = vpack.c.b16 %v953, %v945
    %v1714 = vpack.c.b16 %v954, %v946
    %v1715 = vpack.c.b16 %v955, %v947
    %v1716 = vpack.c.b16 %v956, %v948
    %v1717 = vpack.c.b16 %v957, %v949
    %v1718 = vpack.c.b16 %v958, %v950
    %v1719 = vpack.c.b16 %v959, %v951
    %v1720 = vpack.c.b16 %v968, %v960
    %v1721 = vpack.c.b16 %v969, %v961
    %v1722 = vpack.c.b16 %v970, %v962
    %v1723 = vpack.c.b16 %v971, %v963
    %v1724 = vpack.c.b16 %v972, %v964
    %v1725 = vpack.c.b16 %v973, %v965
    %v1726 = vpack.c.b16 %v974, %v966
    %v1727 = vpack.c.b16 %v975, %v967
    %v1728 = vpack.c.b16 %v984, %v976
    %v1729 = vpack.c.b16 %v985, %v977
    %v1730 = vpack.c.b16 %v986, %v978
    %v1731 = vpack.c.b16 %v987, %v979
    %v1732 = vpack.c.b16 %v988, %v980
    %v1733 = vpack.c.b16 %v989, %v981
    %v1734 = vpack.c.b16 %v990, %v982
    %v1735 = vpack.c.b16 %v991, %v983
    %v1736 = vpack.c.b16 %v1000, %v992
    %v1737 = vpack.c.b16 %v1001, %v993
    %v1738 = vpack.c.b16 %v1002, %v994
    %v1739 = vpack.c.b16 %v1003, %v995
    %v1740 = vpack.c.b16 %v1004, %v996
    %v1741 = vpack.c.b16 %v1005, %v997
    %v1742 = vpack.c.b16 %v1006, %v998
    %v1743 = vpack.c.b16 %v1007, %v999
    %v1744 = vpack.c.b16 %v1016, %v1008
    %v1745 = vpack.c.b16 %v1017, %v1009
    %v1746 = vpack.c.b16 %v1018, %v1010
    %v1747 = vpack.c.b16 %v1019, %v1011
    %v1748 = vpack.c.b16 %v1020, %v1012
    %v1749 = vpack.c.b16 %v1021, %v1013
    %v1750 = vpack.c.b16 %v1022, %v1014
    %v1751 = vpack.c.b16 %v1023, %v1015
    %v1752 = vpack.c.b16 %v1032, %v1024
    %v1753 = vpack.c.b16 %v1033, %v1025
    %v1754 = vpack.c.b16 %v1034, %v1026
    %v1755 = vpack.c.b16 %v1035, %v1027
    %v1756 = vpack.c.b16 %v1036, %v1028
    %v1757 = vpack.c.b16 %v1037, %v1029
    %v1758 = vpack.c.b16 %v1038, %v1030
    %v1759 = vpack.c.b16 %v1039, %v1031
    %v1760 = vpack.c.b16 %v1048, %v1040
    %v1761 = vpack.c.b16 %v1049, %v1041
    %v1762 = vpack.c.b16 %v1050, %v1042
    %v1763 = vpack.c.b16 %v1051, %v1043
    %v1764 = vpack.c.b16 %v1052, %v1044
    %v1765 = vpack.c.b16 %v1053, %v1045
    %v1766 = vpack.c.b16 %v1054, %v1046
    %v1767 = vpack.c.b16 %v1055, %v1047
    %v1768 = vpack.c.b16 %v1064, %v1056
    %v1769 = vpack.c.b16 %v1065, %v1057
    %v1770 = vpack.c.b16 %v1066, %v1058
    %v1771 = vpack.c.b16 %v1067, %v1059
    %v1772 = vpack.c.b16 %v1068, %v1060
    %v1773 = vpack.c.b16 %v1069, %v1061
    %v1774 = vpack.c.b16 %v1070, %v1062
    %v1775 = vpack.c.b16 %v1071, %v1063
    %v1776 = vpack.c.b16 %v1080, %v1072
    %v1777 = vpack.c.b16 %v1081, %v1073
    %v1778 = vpack.c.b16 %v1082, %v1074
    %v1779 = vpack.c.b16 %v1083, %v1075
    %v1780 = vpack.c.b16 %v1084, %v1076
    %v1781 = vpack.c.b16 %v1085, %v1077
    %v1782 = vpack.c.b16 %v1086, %v1078
    %v1783 = vpack.c.b16 %v1087, %v1079
    %v1784 = vpack.c.b16 %v1096, %v1088
    %v1785 = vpack.c.b16 %v1097, %v1089
    %v1786 = vpack.c.b16 %v1098, %v1090
    %v1787 = vpack.c.b16 %v1099, %v1091
    %v1788 = vpack.c.b16 %v1100, %v1092
    %v1789 = vpack.c.b16 %v1101, %v1093
    %v1790 = vpack.c.b16 %v1102, %v1094
    %v1791 = vpack.c.b16 %v1103, %v1095
    %v1792 = vpack.c.b16 %v1112, %v1104
    %v1793 = vpack.c.b16 %v1113, %v1105
    %v1794 = vpack.c.b16 %v1114, %v1106
    %v1795 = vpack.c.b16 %v1115, %v1107
    %v1796 = vpack.c.b16 %v1116, %v1108
    %v1797 = vpack.c.b16 %v1117, %v1109
    %v1798 = vpack.c.b16 %v1118, %v1110
    %v1799 = vpack.c.b16 %v1119, %v1111
    %v1800 = vpack.c.b16 %v1128, %v1120
    %v1801 = vpack.c.b16 %v1129, %v1121
    %v1802 = vpack.c.b16 %v1130, %v1122
    %v1803 = vpack.c.b16 %v1131, %v1123
    %v1804 = vpack.c.b16 %v1132, %v1124
    %v1805 = vpack.c.b16 %v1133, %v1125
    %v1806 = vpack.c.b16 %v1134, %v1126
    %v1807 = vpack.c.b16 %v1135, %v1127
    %v1808 = vpack.c.b16 %v1144, %v1136
    %v1809 = vpack.c.b16 %v1145, %v1137
    %v1810 = vpack.c.b16 %v1146, %v1138
    %v1811 = vpack.c.b16 %v1147, %v1139
    %v1812 = vpack.c.b16 %v1148, %v1140
    %v1813 = vpack.c.b16 %v1149, %v1141
    %v1814 = vpack.c.b16 %v1150, %v1142
    %v1815 = vpack.c.b16 %v1151, %v1143
    %v1816 = vpack.c.b16 %v1160, %v1152
    %v1817 = vpack.c.b16 %v1161, %v1153
    %v1818 = vpack.c.b16 %v1162, %v1154
    %v1819 = vpack.c.b16 %v1163, %v1155
    %v1820 = vpack.c.b16 %v1164, %v1156
    %v1821 = vpack.c.b16 %v1165, %v1157
    %v1822 = vpack.c.b16 %v1166, %v1158
    %v1823 = vpack.c.b16 %v1167, %v1159
    %v1824 = vpack.c.b16 %v1176, %v1168
    %v1825 = vpack.c.b16 %v1177, %v1169
    %v1826 = vpack.c.b16 %v1178, %v1170
    %v1827 = vpack.c.b16 %v1179, %v1171
    %v1828 = vpack.c.b16 %v1180, %v1172
    %v1829 = vpack.c.b16 %v1181, %v1173
    %v1830 = vpack.c.b16 %v1182, %v1174
    %v1831 = vpack.c.b16 %v1183, %v1175
    %v1832 = vpack.c.b16 %v1192, %v1184
    %v1833 = vpack.c.b16 %v1193, %v1185
    %v1834 = vpack.c.b16 %v1194, %v1186
    %v1835 = vpack.c.b16 %v1195, %v1187
    %v1836 = vpack.c.b16 %v1196, %v1188
    %v1837 = vpack.c.b16 %v1197, %v1189
    %v1838 = vpack.c.b16 %v1198, %v1190
    %v1839 = vpack.c.b16 %v1199, %v1191
    %v1840 = vpack.c.b16 %v1208, %v1200
    %v1841 = vpack.c.b16 %v1209, %v1201
    %v1842 = vpack.c.b16 %v1210, %v1202
    %v1843 = vpack.c.b16 %v1211, %v1203
    %v1844 = vpack.c.b16 %v1212, %v1204
    %v1845 = vpack.c.b16 %v1213, %v1205
    %v1846 = vpack.c.b16 %v1214, %v1206
    %v1847 = vpack.c.b16 %v1215, %v1207
    %v1848 = vpack.c.b16 %v1224, %v1216
    %v1849 = vpack.c.b16 %v1225, %v1217
    %v1850 = vpack.c.b16 %v1226, %v1218
    %v1851 = vpack.c.b16 %v1227, %v1219
    %v1852 = vpack.c.b16 %v1228, %v1220
    %v1853 = vpack.c.b16 %v1229, %v1221
    %v1854 = vpack.c.b16 %v1230, %v1222
    %v1855 = vpack.c.b16 %v1231, %v1223
    %v1856 = vpack.c.b16 %v1240, %v1232
    %v1857 = vpack.c.b16 %v1241, %v1233
    %v1858 = vpack.c.b16 %v1242, %v1234
    %v1859 = vpack.c.b16 %v1243, %v1235
    %v1860 = vpack.c.b16 %v1244, %v1236
    %v1861 = vpack.c.b16 %v1245, %v1237
    %v1862 = vpack.c.b16 %v1246, %v1238
    %v1863 = vpack.c.b16 %v1247, %v1239
    %v1864 = vpack.c.b16 %v1256, %v1248
    %v1865 = vpack.c.b16 %v1257, %v1249
    %v1866 = vpack.c.b16 %v1258, %v1250
    %v1867 = vpack.c.b16 %v1259, %v1251
    %v1868 = vpack.c.b16 %v1260, %v1252
    %v1869 = vpack.c.b16 %v1261, %v1253
    %v1870 = vpack.c.b16 %v1262, %v1254
    %v1871 = vpack.c.b16 %v1263, %v1255
    %v1872 = vpack.c.b16 %v1272, %v1264
    %v1873 = vpack.c.b16 %v1273, %v1265
    %v1874 = vpack.c.b16 %v1274, %v1266
    %v1875 = vpack.c.b16 %v1275, %v1267
    %v1876 = vpack.c.b16 %v1276, %v1268
    %v1877 = vpack.c.b16 %v1277, %v1269
    %v1878 = vpack.c.b16 %v1278, %v1270
    %v1879 = vpack.c.b16 %v1279, %v1271
    %v1880 = vpack.c.b16 %v1288, %v1280
    %v1881 = vpack.c.b16 %v1289, %v1281
    %v1882 = vpack.c.b16 %v1290, %v1282
    %v1883 = vpack.c.b16 %v1291, %v1283
    %v1884 = vpack.c.b16 %v1292, %v1284
    %v1885 = vpack.c.b16 %v1293, %v1285
    %v1886 = vpack.c.b16 %v1294, %v1286
    %v1887 = vpack.c.b16 %v1295, %v1287
    %v1888 = vpack.c.b16 %v1304, %v1296
    %v1889 = vpack.c.b16 %v1305, %v1297
    %v1890 = vpack.c.b16 %v1306, %v1298
    %v1891 = vpack.c.b16 %v1307, %v1299
    %v1892 = vpack.c.b16 %v1308, %v1300
    %v1893 = vpack.c.b16 %v1309, %v1301
    %v1894 = vpack.c.b16 %v1310, %v1302
    %v1895 = vpack.c.b16 %v1311, %v1303
    %v1896 = vpack.c.b16 %v1320, %v1312
    %v1897 = vpack.c.b16 %v1321, %v1313
    %v1898 = vpack.c.b16 %v1322, %v1314
    %v1899 = vpack.c.b16 %v1323, %v1315
    %v1900 = vpack.c.b16 %v1324, %v1316
    %v1901 = vpack.c.b16 %v1325, %v1317
    %v1902 = vpack.c.b16 %v1326, %v1318
    %v1903 = vpack.c.b16 %v1327, %v1319
    %v1904 = vpack.c.b16 %v1336, %v1328
    %v1905 = vpack.c.b16 %v1337, %v1329
    %v1906 = vpack.c.b16 %v1338, %v1330
    %v1907 = vpack.c.b16 %v1339, %v1331
    %v1908 = vpack.c.b16 %v1340, %v1332
    %v1909 = vpack.c.b16 %v1341, %v1333
    %v1910 = vpack.c.b16 %v1342, %v1334
    %v1911 = vpack.c.b16 %v1343, %v1335
    %v1912 = vpack.c.b16 %v1352, %v1344
    %v1913 = vpack.c.b16 %v1353, %v1345
    %v1914 = vpack.c.b16 %v1354, %v1346
    %v1915 = vpack.c.b16 %v1355, %v1347
    %v1916 = vpack.c.b16 %v1356, %v1348
    %v1917 = vpack.c.b16 %v1357, %v1349
    %v1918 = vpack.c.b16 %v1358, %v1350
    %v1919 = vpack.c.b16 %v1359, %v1351
    %v1920 = vpack.c.b16 %v1368, %v1360
    %v1921 = vpack.c.b16 %v1369, %v1361
    %v1922 = vpack.c.b16 %v1370, %v1362
    %v1923 = vpack.c.b16 %v1371, %v1363
    %v1924 = vpack.c.b16 %v1372, %v1364
    %v1925 = vpack.c.b16 %v1373, %v1365
    %v1926 = vpack.c.b16 %v1374, %v1366
    %v1927 = vpack.c.b16 %v1375, %v1367
    %v1928 = vpack.c.b16 %v1384, %v1376
    %v1929 = vpack.c.b16 %v1385, %v1377
    %v1930 = vpack.c.b16 %v1386, %v1378
    %v1931 = vpack.c.b16 %v1387, %v1379
    %v1932 = vpack.c.b16 %v1388, %v1380
    %v1933 = vpack.c.b16 %v1389, %v1381
    %v1934 = vpack.c.b16 %v1390, %v1382
    %v1935 = vpack.c.b16 %v1391, %v1383
    %v1936 = vpack.c.b16 %v1400, %v1392
    %v1937 = vpack.c.b16 %v1401, %v1393
    %v1938 = vpack.c.b16 %v1402, %v1394
    %v1939 = vpack.c.b16 %v1403, %v1395
    %v1940 = vpack.c.b16 %v1404, %v1396
    %v1941 = vpack.c.b16 %v1405, %v1397
    %v1942 = vpack.c.b16 %v1406, %v1398
    %v1943 = vpack.c.b16 %v1407, %v1399
    %v1944 = vpack.c.b16 %v1416, %v1408
    %v1945 = vpack.c.b16 %v1417, %v1409
    %v1946 = vpack.c.b16 %v1418, %v1410
    %v1947 = vpack.c.b16 %v1419, %v1411
    %v1948 = vpack.c.b16 %v1420, %v1412
    %v1949 = vpack.c.b16 %v1421, %v1413
    %v1950 = vpack.c.b16 %v1422, %v1414
    %v1951 = vpack.c.b16 %v1423, %v1415
    %v1952 = vpack.c.b16 %v1432, %v1424
    %v1953 = vpack.c.b16 %v1433, %v1425
    %v1954 = vpack.c.b16 %v1434, %v1426
    %v1955 = vpack.c.b16 %v1435, %v1427
    %v1956 = vpack.c.b16 %v1436, %v1428
    %v1957 = vpack.c.b16 %v1437, %v1429
    %v1958 = vpack.c.b16 %v1438, %v1430
    %v1959 = vpack.c.b16 %v1439, %v1431
    %v1960 = vpack.c.b16 %v1448, %v1440
    %v1961 = vpack.c.b16 %v1449, %v1441
    %v1962 = vpack.c.b16 %v1450, %v1442
    %v1963 = vpack.c.b16 %v1451, %v1443
    %v1964 = vpack.c.b16 %v1452, %v1444
    %v1965 = vpack.c.b16 %v1453, %v1445
    %v1966 = vpack.c.b16 %v1454, %v1446
    %v1967 = vpack.c.b16 %v1455, %v1447
    %v1968 = vpack.c.b16 %v1464, %v1456
    %v1969 = vpack.c.b16 %v1465, %v1457
    %v1970 = vpack.c.b16 %v1466, %v1458
    %v1971 = vpack.c.b16 %v1467, %v1459
    %v1972 = vpack.c.b16 %v1468, %v1460
    %v1973 = vpack.c.b16 %v1469, %v1461
    %v1974 = vpack.c.b16 %v1470, %v1462
    %v1975 = vpack.c.b16 %v1471, %v1463
    %v1976 = vpack.c.b16 %v1480, %v1472
    %v1977 = vpack.c.b16 %v1481, %v1473
    %v1978 = vpack.c.b16 %v1482, %v1474
    %v1979 = vpack.c.b16 %v1483, %v1475
    %v1980 = vpack.c.b16 %v1484, %v1476
    %v1981 = vpack.c.b16 %v1485, %v1477
    %v1982 = vpack.c.b16 %v1486, %v1478
    %v1983 = vpack.c.b16 %v1487, %v1479
    %v1984 = vpack.c.b16 %v1496, %v1488
    %v1985 = vpack.c.b16 %v1497, %v1489
    %v1986 = vpack.c.b16 %v1498, %v1490
    %v1987 = vpack.c.b16 %v1499, %v1491
    %v1988 = vpack.c.b16 %v1500, %v1492
    %v1989 = vpack.c.b16 %v1501, %v1493
    %v1990 = vpack.c.b16 %v1502, %v1494
    %v1991 = vpack.c.b16 %v1503, %v1495
    %v1992 = vpack.c.b16 %v1512, %v1504
    %v1993 = vpack.c.b16 %v1513, %v1505
    %v1994 = vpack.c.b16 %v1514, %v1506
    %v1995 = vpack.c.b16 %v1515, %v1507
    %v1996 = vpack.c.b16 %v1516, %v1508
    %v1997 = vpack.c.b16 %v1517, %v1509
    %v1998 = vpack.c.b16 %v1518, %v1510
    %v1999 = vpack.c.b16 %v1519, %v1511
    %v2000 = vpack.c.b16 %v1528, %v1520
    %v2001 = vpack.c.b16 %v1529, %v1521
    %v2002 = vpack.c.b16 %v1530, %v1522
    %v2003 = vpack.c.b16 %v1531, %v1523
    %v2004 = vpack.c.b16 %v1532, %v1524
    %v2005 = vpack.c.b16 %v1533, %v1525
    %v2006 = vpack.c.b16 %v1534, %v1526
    %v2007 = vpack.c.b16 %v1535, %v1527
    %v2008 = vpack.c.b16 %v1544, %v1536
    %v2009 = vpack.c.b16 %v1545, %v1537
    %v2010 = vpack.c.b16 %v1546, %v1538
    %v2011 = vpack.c.b16 %v1547, %v1539
    %v2012 = vpack.c.b16 %v1548, %v1540
    %v2013 = vpack.c.b16 %v1549, %v1541
    %v2014 = vpack.c.b16 %v1550, %v1542
    %v2015 = vpack.c.b16 %v1551, %v1543
    %v2016 = vpack.c.b16 %v1560, %v1552
    %v2017 = vpack.c.b16 %v1561, %v1553
    %v2018 = vpack.c.b16 %v1562, %v1554
    %v2019 = vpack.c.b16 %v1563, %v1555
    %v2020 = vpack.c.b16 %v1564, %v1556
    %v2021 = vpack.c.b16 %v1565, %v1557
    %v2022 = vpack.c.b16 %v1566, %v1558
    %v2023 = vpack.c.b16 %v1567, %v1559
    %v2024 = vpack.c.b16 %v1576, %v1568
    %v2025 = vpack.c.b16 %v1577, %v1569
    %v2026 = vpack.c.b16 %v1578, %v1570
    %v2027 = vpack.c.b16 %v1579, %v1571
    %v2028 = vpack.c.b16 %v1580, %v1572
    %v2029 = vpack.c.b16 %v1581, %v1573
    %v2030 = vpack.c.b16 %v1582, %v1574
    %v2031 = vpack.c.b16 %v1583, %v1575
    %v2032 = vpack.c.b16 %v1592, %v1584
    %v2033 = vpack.c.b16 %v1593, %v1585
    %v2034 = vpack.c.b16 %v1594, %v1586
    %v2035 = vpack.c.b16 %v1595, %v1587
    %v2036 = vpack.c.b16 %v1596, %v1588
    %v2037 = vpack.c.b16 %v1597, %v1589
    %v2038 = vpack.c.b16 %v1598, %v1590
    %v2039 = vpack.c.b16 %v1599, %v1591
    %v2040 = vpack.c.b16 %v1608, %v1600
    %v2041 = vpack.c.b16 %v1609, %v1601
    %v2042 = vpack.c.b16 %v1610, %v1602
    %v2043 = vpack.c.b16 %v1611, %v1603
    %v2044 = vpack.c.b16 %v1612, %v1604
    %v2045 = vpack.c.b16 %v1613, %v1605
    %v2046 = vpack.c.b16 %v1614, %v1606
    %v2047 = vpack.c.b16 %v1615, %v1607
    %v2048 = vpack.c.b16 %v1624, %v1616
    %v2049 = vpack.c.b16 %v1625, %v1617
    %v2050 = vpack.c.b16 %v1626, %v1618
    %v2051 = vpack.c.b16 %v1627, %v1619
    %v2052 = vpack.c.b16 %v1628, %v1620
    %v2053 = vpack.c.b16 %v1629, %v1621
    %v2054 = vpack.c.b16 %v1630, %v1622
    %v2055 = vpack.c.b16 %v1631, %v1623
    %v2056 = vpack.c.b16 %v1640, %v1632
    %v2057 = vpack.c.b16 %v1641, %v1633
    %v2058 = vpack.c.b16 %v1642, %v1634
    %v2059 = vpack.c.b16 %v1643, %v1635
    %v2060 = vpack.c.b16 %v1644, %v1636
    %v2061 = vpack.c.b16 %v1645, %v1637
    %v2062 = vpack.c.b16 %v1646, %v1638
    %v2063 = vpack.c.b16 %v1647, %v1639
    %v2064 = vpack.c.b16 %v1656, %v1648
    %v2065 = vpack.c.b16 %v1657, %v1649
    %v2066 = vpack.c.b16 %v1658, %v1650
    %v2067 = vpack.c.b16 %v1659, %v1651
    %v2068 = vpack.c.b16 %v1660, %v1652
    %v2069 = vpack.c.b16 %v1661, %v1653
    %v2070 = vpack.c.b16 %v1662, %v1654
    %v2071 = vpack.c.b16 %v1663, %v1655
    %v2072 = vpack.c.b16 %v1672, %v1664
    %v2073 = vpack.c.b16 %v1673, %v1665
    %v2074 = vpack.c.b16 %v1674, %v1666
    %v2075 = vpack.c.b16 %v1675, %v1667
    %v2076 = vpack.c.b16 %v1676, %v1668
    %v2077 = vpack.c.b16 %v1677, %v1669
    %v2078 = vpack.c.b16 %v1678, %v1670
    %v2079 = vpack.c.b16 %v1679, %v1671
    %v2080 = vpack.c.b16 %v1688, %v1680
    %v2081 = vpack.c.b16 %v1689, %v1681
    %v2082 = vpack.c.b16 %v1690, %v1682
    %v2083 = vpack.c.b16 %v1691, %v1683
    %v2084 = vpack.c.b16 %v1692, %v1684
    %v2085 = vpack.c.b16 %v1693, %v1685
    %v2086 = vpack.c.b16 %v1694, %v1686
    %v2087 = vpack.c.b16 %v1695, %v1687
    %vm2480 = vcmask 130048
    %v2482 = vsel %vm2480, %v85, 0
    %2484 = vmatprep.subr.bf16.mxu0 %v1753
    %2485 = vmatpush1.bf16.msra.mxu0 %v1752
    %2486 = vmatprep.subr.bf16.mxu0 %v1745
    %2487 = vmatpush1.bf16.msra.mxu0 %v1744
    %2488 = vmatprep.subr.bf16.mxu0 %v1737
    %2489 = vmatpush1.bf16.msra.mxu0 %v1736
    %2490 = vmatprep.subr.bf16.mxu0 %v1729
    %2491 = vmatpush1.bf16.msra.mxu0 %v1728
    %2492 = vmatprep.subr.bf16.mxu0 %v1721
    %2493 = vmatpush1.bf16.msra.mxu0 %v1720
    %2494 = vmatprep.subr.bf16.mxu0 %v1713
    %2495 = vmatpush1.bf16.msra.mxu0 %v1712
    %2496 = vmatprep.subr.bf16.mxu0 %v1705
    %2497 = vmatpush1.bf16.msra.mxu0 %v1704
    %2498 = vmatprep.subr.bf16.mxu0 %v1697
    %2499 = vmatpush1.bf16.msra.mxu0 %v1696
    %2500 = vmatprep.subr.bf16.mxu0 %v1817
    %2501 = vmatpush2.bf16.msra.mxu0 %v1816
    %2502 = vmatprep.subr.bf16.mxu0 %v1809
    %2503 = vmatpush2.bf16.msra.mxu0 %v1808
    %2504 = vmatprep.subr.bf16.mxu0 %v1801
    %2505 = vmatpush2.bf16.msra.mxu0 %v1800
    %2506 = vmatprep.subr.bf16.mxu0 %v1793
    %2507 = vmatpush2.bf16.msra.mxu0 %v1792
    %2508 = vmatprep.subr.bf16.mxu0 %v1785
    %2509 = vmatpush2.bf16.msra.mxu0 %v1784
    %2510 = vmatprep.subr.bf16.mxu0 %v1777
    %2511 = vmatpush2.bf16.msra.mxu0 %v1776
    %2512 = vmatprep.subr.bf16.mxu0 %v1769
    %2513 = vmatpush2.bf16.msra.mxu0 %v1768
    %2514 = vmatprep.subr.bf16.mxu0 %v1761
    %2515 = vmatpush2.bf16.msra.mxu0 %v1760
    %2516 = vmatprep.mubr.bf16.mxu0 %v80
    %2517 = vmatmul.mubr.bf16.gmra.mxu0 %v79
    %v2518 = vpop.f32.mrf.mxu0
    %v2519 = vadd.f32 %v483, %v2518
    %v2520 = vpop.f32.mrf.mxu0
    %v2521 = vadd.f32 %v487, %v2520
    %v2522 = vpop.f32.mrf.mxu0
    %v2523 = vpop.f32.mrf.mxu0
    %2524 = vdwg.mxu0
    %2525 = vmatprep.subr.bf16.mxu0 %v1881
    %2526 = vmatpush1.bf16.msra.mxu0 %v1880
    %2527 = vmatprep.subr.bf16.mxu0 %v1873
    %2528 = vmatpush1.bf16.msra.mxu0 %v1872
    %2529 = vmatprep.subr.bf16.mxu0 %v1865
    %2530 = vmatpush1.bf16.msra.mxu0 %v1864
    %2531 = vmatprep.subr.bf16.mxu0 %v1857
    %2532 = vmatpush1.bf16.msra.mxu0 %v1856
    %2533 = vmatprep.subr.bf16.mxu0 %v1849
    %2534 = vmatpush1.bf16.msra.mxu0 %v1848
    %2535 = vmatprep.subr.bf16.mxu0 %v1841
    %2536 = vmatpush1.bf16.msra.mxu0 %v1840
    %2537 = vmatprep.subr.bf16.mxu0 %v1833
    %2538 = vmatpush1.bf16.msra.mxu0 %v1832
    %2539 = vmatprep.subr.bf16.mxu0 %v1825
    %2540 = vmatpush1.bf16.msra.mxu0 %v1824
    %2541 = vmatprep.subr.bf16.mxu0 %v1945
    %2542 = vmatpush2.bf16.msra.mxu0 %v1944
    %2543 = vmatprep.subr.bf16.mxu0 %v1937
    %2544 = vmatpush2.bf16.msra.mxu0 %v1936
    %2545 = vmatprep.subr.bf16.mxu0 %v1929
    %2546 = vmatpush2.bf16.msra.mxu0 %v1928
    %2547 = vmatprep.subr.bf16.mxu0 %v1921
    %2548 = vmatpush2.bf16.msra.mxu0 %v1920
    %2549 = vmatprep.subr.bf16.mxu0 %v1913
    %2550 = vmatpush2.bf16.msra.mxu0 %v1912
    %2551 = vmatprep.subr.bf16.mxu0 %v1905
    %2552 = vmatpush2.bf16.msra.mxu0 %v1904
    %2553 = vmatprep.subr.bf16.mxu0 %v1897
    %2554 = vmatpush2.bf16.msra.mxu0 %v1896
    %2555 = vmatprep.subr.bf16.mxu0 %v1889
    %2556 = vmatpush2.bf16.msra.mxu0 %v1888
    %2557 = vmatprep.mubr.bf16.mxu0 %v82
    %2558 = vmatmul.mubr.bf16.gmra.mxu0 %v81
    %v2559 = vpop.f32.mrf.mxu0
    %v2560 = vadd.f32 %v2519, %v2559
    %v2561 = vpop.f32.mrf.mxu0
    %v2562 = vadd.f32 %v2521, %v2561
    %v2563 = vpop.f32.mrf.mxu0
    %v2564 = vpop.f32.mrf.mxu0
    %2565 = vdwg.mxu0
    %2566 = vmatprep.subr.bf16.mxu0 %v2009
    %2567 = vmatpush1.bf16.msra.mxu0 %v2008
    %2568 = vmatprep.subr.bf16.mxu0 %v2001
    %2569 = vmatpush1.bf16.msra.mxu0 %v2000
    %2570 = vmatprep.subr.bf16.mxu0 %v1993
    %2571 = vmatpush1.bf16.msra.mxu0 %v1992
    %2572 = vmatprep.subr.bf16.mxu0 %v1985
    %2573 = vmatpush1.bf16.msra.mxu0 %v1984
    %2574 = vmatprep.subr.bf16.mxu0 %v1977
    %2575 = vmatpush1.bf16.msra.mxu0 %v1976
    %2576 = vmatprep.subr.bf16.mxu0 %v1969
    %2577 = vmatpush1.bf16.msra.mxu0 %v1968
    %2578 = vmatprep.subr.bf16.mxu0 %v1961
    %2579 = vmatpush1.bf16.msra.mxu0 %v1960
    %2580 = vmatprep.subr.bf16.mxu0 %v1953
    %2581 = vmatpush1.bf16.msra.mxu0 %v1952
    %2582 = vmatprep.subr.bf16.mxu0 %v2073
    %2583 = vmatpush2.bf16.msra.mxu0 %v2072
    %2584 = vmatprep.subr.bf16.mxu0 %v2065
    %2585 = vmatpush2.bf16.msra.mxu0 %v2064
    %2586 = vmatprep.subr.bf16.mxu0 %v2057
    %2587 = vmatpush2.bf16.msra.mxu0 %v2056
    %2588 = vmatprep.subr.bf16.mxu0 %v2049
    %2589 = vmatpush2.bf16.msra.mxu0 %v2048
    %2590 = vmatprep.subr.bf16.mxu0 %v2041
    %2591 = vmatpush2.bf16.msra.mxu0 %v2040
    %2592 = vmatprep.subr.bf16.mxu0 %v2033
    %2593 = vmatpush2.bf16.msra.mxu0 %v2032
    %2594 = vmatprep.subr.bf16.mxu0 %v2025
    %2595 = vmatpush2.bf16.msra.mxu0 %v2024
    %2596 = vmatprep.subr.bf16.mxu0 %v2017
    %2597 = vmatpush2.bf16.msra.mxu0 %v2016
    %2598 = vmatprep.mubr.bf16.mxu0 %v84
    %2599 = vmatmul.mubr.bf16.gmra.mxu0 %v83
    %v2600 = vpop.f32.mrf.mxu0
    %v2601 = vadd.f32 %v2560, %v2600
    %v2602 = vpop.f32.mrf.mxu0
    %v2603 = vadd.f32 %v2562, %v2602
    %v2604 = vpop.f32.mrf.mxu0
    %v2605 = vpop.f32.mrf.mxu0
    %2606 = vdwg.mxu0
    %2607 = vmatprep.subr.bf16.mxu0 0
    %2608 = vmatpush1.bf16.msra.mxu0 0
    %2609 = vmatprep.subr.bf16.mxu0 0
    %2610 = vmatpush1.bf16.msra.mxu0 0
    %2611 = vmatprep.subr.bf16.mxu0 0
    %2612 = vmatpush1.bf16.msra.mxu0 0
    %2613 = vmatprep.subr.bf16.mxu0 0
    %2614 = vmatpush1.bf16.msra.mxu0 0
    %2615 = vmatprep.subr.bf16.mxu0 0
    %2616 = vmatpush1.bf16.msra.mxu0 0
    %2617 = vmatprep.subr.bf16.mxu0 0
    %2618 = vmatpush1.bf16.msra.mxu0 0
    %2619 = vmatprep.subr.bf16.mxu0 0
    %2620 = vmatpush1.bf16.msra.mxu0 0
    %2621 = vmatprep.subr.bf16.mxu0 %v2081
    %2622 = vmatpush1.bf16.msra.mxu0 %v2080
    %2623 = vmatprep.subr.bf16.mxu0 0
    %2624 = vmatpush2.bf16.msra.mxu0 0
    %2625 = vmatprep.subr.bf16.mxu0 0
    %2626 = vmatpush2.bf16.msra.mxu0 0
    %2627 = vmatprep.subr.bf16.mxu0 0
    %2628 = vmatpush2.bf16.msra.mxu0 0
    %2629 = vmatprep.subr.bf16.mxu0 0
    %2630 = vmatpush2.bf16.msra.mxu0 0
    %2631 = vmatprep.subr.bf16.mxu0 0
    %2632 = vmatpush2.bf16.msra.mxu0 0
    %2633 = vmatprep.subr.bf16.mxu0 0
    %2634 = vmatpush2.bf16.msra.mxu0 0
    %2635 = vmatprep.subr.bf16.mxu0 0
    %2636 = vmatpush2.bf16.msra.mxu0 0
    %2637 = vmatprep.subr.bf16.mxu0 0
    %2638 = vmatpush2.bf16.msra.mxu0 0
    %2639 = vmatprep.mubr.bf16.mxu0 0
    %2640 = vmatmul.mubr.bf16.gmra.mxu0 %v2482
    %v2641 = vpop.f32.mrf.mxu0
    %v2642 = vadd.f32 %v2601, %v2641
    %v2643 = vpop.f32.mrf.mxu0
    %v2644 = vadd.f32 %v2603, %v2643
    %v2645 = vpop.f32.mrf.mxu0
    %v2646 = vpop.f32.mrf.mxu0
    %2647 = vdwg.mxu0
    %2648 = vmatprep.subr.bf16.mxu0 %v1755
    %2649 = vmatpush1.bf16.msra.mxu0 %v1754
    %2650 = vmatprep.subr.bf16.mxu0 %v1747
    %2651 = vmatpush1.bf16.msra.mxu0 %v1746
    %2652 = vmatprep.subr.bf16.mxu0 %v1739
    %2653 = vmatpush1.bf16.msra.mxu0 %v1738
    %2654 = vmatprep.subr.bf16.mxu0 %v1731
    %2655 = vmatpush1.bf16.msra.mxu0 %v1730
    %2656 = vmatprep.subr.bf16.mxu0 %v1723
    %2657 = vmatpush1.bf16.msra.mxu0 %v1722
    %2658 = vmatprep.subr.bf16.mxu0 %v1715
    %2659 = vmatpush1.bf16.msra.mxu0 %v1714
    %2660 = vmatprep.subr.bf16.mxu0 %v1707
    %2661 = vmatpush1.bf16.msra.mxu0 %v1706
    %2662 = vmatprep.subr.bf16.mxu0 %v1699
    %2663 = vmatpush1.bf16.msra.mxu0 %v1698
    %2664 = vmatprep.subr.bf16.mxu0 %v1819
    %2665 = vmatpush2.bf16.msra.mxu0 %v1818
    %2666 = vmatprep.subr.bf16.mxu0 %v1811
    %2667 = vmatpush2.bf16.msra.mxu0 %v1810
    %2668 = vmatprep.subr.bf16.mxu0 %v1803
    %2669 = vmatpush2.bf16.msra.mxu0 %v1802
    %2670 = vmatprep.subr.bf16.mxu0 %v1795
    %2671 = vmatpush2.bf16.msra.mxu0 %v1794
    %2672 = vmatprep.subr.bf16.mxu0 %v1787
    %2673 = vmatpush2.bf16.msra.mxu0 %v1786
    %2674 = vmatprep.subr.bf16.mxu0 %v1779
    %2675 = vmatpush2.bf16.msra.mxu0 %v1778
    %2676 = vmatprep.subr.bf16.mxu0 %v1771
    %2677 = vmatpush2.bf16.msra.mxu0 %v1770
    %2678 = vmatprep.subr.bf16.mxu0 %v1763
    %2679 = vmatpush2.bf16.msra.mxu0 %v1762
    %2680 = vmatprep.mubr.bf16.mxu0 %v80
    %2681 = vmatmul.mubr.bf16.gmra.mxu0 %v79
    %v2682 = vpop.f32.mrf.mxu0
    %v2683 = vadd.f32 %v491, %v2682
    %v2684 = vpop.f32.mrf.mxu0
    %v2685 = vadd.f32 %v495, %v2684
    %v2686 = vpop.f32.mrf.mxu0
    %v2687 = vpop.f32.mrf.mxu0
    %2688 = vdwg.mxu0
    %2689 = vmatprep.subr.bf16.mxu0 %v1883
    %2690 = vmatpush1.bf16.msra.mxu0 %v1882
    %2691 = vmatprep.subr.bf16.mxu0 %v1875
    %2692 = vmatpush1.bf16.msra.mxu0 %v1874
    %2693 = vmatprep.subr.bf16.mxu0 %v1867
    %2694 = vmatpush1.bf16.msra.mxu0 %v1866
    %2695 = vmatprep.subr.bf16.mxu0 %v1859
    %2696 = vmatpush1.bf16.msra.mxu0 %v1858
    %2697 = vmatprep.subr.bf16.mxu0 %v1851
    %2698 = vmatpush1.bf16.msra.mxu0 %v1850
    %2699 = vmatprep.subr.bf16.mxu0 %v1843
    %2700 = vmatpush1.bf16.msra.mxu0 %v1842
    %2701 = vmatprep.subr.bf16.mxu0 %v1835
    %2702 = vmatpush1.bf16.msra.mxu0 %v1834
    %2703 = vmatprep.subr.bf16.mxu0 %v1827
    %2704 = vmatpush1.bf16.msra.mxu0 %v1826
    %2705 = vmatprep.subr.bf16.mxu0 %v1947
    %2706 = vmatpush2.bf16.msra.mxu0 %v1946
    %2707 = vmatprep.subr.bf16.mxu0 %v1939
    %2708 = vmatpush2.bf16.msra.mxu0 %v1938
    %2709 = vmatprep.subr.bf16.mxu0 %v1931
    %2710 = vmatpush2.bf16.msra.mxu0 %v1930
    %2711 = vmatprep.subr.bf16.mxu0 %v1923
    %2712 = vmatpush2.bf16.msra.mxu0 %v1922
    %2713 = vmatprep.subr.bf16.mxu0 %v1915
    %2714 = vmatpush2.bf16.msra.mxu0 %v1914
    %2715 = vmatprep.subr.bf16.mxu0 %v1907
    %2716 = vmatpush2.bf16.msra.mxu0 %v1906
    %2717 = vmatprep.subr.bf16.mxu0 %v1899
    %2718 = vmatpush2.bf16.msra.mxu0 %v1898
    %2719 = vmatprep.subr.bf16.mxu0 %v1891
    %2720 = vmatpush2.bf16.msra.mxu0 %v1890
    %2721 = vmatprep.mubr.bf16.mxu0 %v82
    %2722 = vmatmul.mubr.bf16.gmra.mxu0 %v81
    %v2723 = vpop.f32.mrf.mxu0
    %v2724 = vadd.f32 %v2683, %v2723
    %v2725 = vpop.f32.mrf.mxu0
    %v2726 = vadd.f32 %v2685, %v2725
    %v2727 = vpop.f32.mrf.mxu0
    %v2728 = vpop.f32.mrf.mxu0
    %2729 = vdwg.mxu0
    %2730 = vmatprep.subr.bf16.mxu0 %v2011
    %2731 = vmatpush1.bf16.msra.mxu0 %v2010
    %2732 = vmatprep.subr.bf16.mxu0 %v2003
    %2733 = vmatpush1.bf16.msra.mxu0 %v2002
    %2734 = vmatprep.subr.bf16.mxu0 %v1995
    %2735 = vmatpush1.bf16.msra.mxu0 %v1994
    %2736 = vmatprep.subr.bf16.mxu0 %v1987
    %2737 = vmatpush1.bf16.msra.mxu0 %v1986
    %2738 = vmatprep.subr.bf16.mxu0 %v1979
    %2739 = vmatpush1.bf16.msra.mxu0 %v1978
    %2740 = vmatprep.subr.bf16.mxu0 %v1971
    %2741 = vmatpush1.bf16.msra.mxu0 %v1970
    %2742 = vmatprep.subr.bf16.mxu0 %v1963
    %2743 = vmatpush1.bf16.msra.mxu0 %v1962
    %2744 = vmatprep.subr.bf16.mxu0 %v1955
    %2745 = vmatpush1.bf16.msra.mxu0 %v1954
    %2746 = vmatprep.subr.bf16.mxu0 %v2075
    %2747 = vmatpush2.bf16.msra.mxu0 %v2074
    %2748 = vmatprep.subr.bf16.mxu0 %v2067
    %2749 = vmatpush2.bf16.msra.mxu0 %v2066
    %2750 = vmatprep.subr.bf16.mxu0 %v2059
    %2751 = vmatpush2.bf16.msra.mxu0 %v2058
    %2752 = vmatprep.subr.bf16.mxu0 %v2051
    %2753 = vmatpush2.bf16.msra.mxu0 %v2050
    %2754 = vmatprep.subr.bf16.mxu0 %v2043
    %2755 = vmatpush2.bf16.msra.mxu0 %v2042
    %2756 = vmatprep.subr.bf16.mxu0 %v2035
    %2757 = vmatpush2.bf16.msra.mxu0 %v2034
    %2758 = vmatprep.subr.bf16.mxu0 %v2027
    %2759 = vmatpush2.bf16.msra.mxu0 %v2026
    %2760 = vmatprep.subr.bf16.mxu0 %v2019
    %2761 = vmatpush2.bf16.msra.mxu0 %v2018
    %2762 = vmatprep.mubr.bf16.mxu0 %v84
    %2763 = vmatmul.mubr.bf16.gmra.mxu0 %v83
    %v2764 = vpop.f32.mrf.mxu0
    %v2765 = vadd.f32 %v2724, %v2764
    %v2766 = vpop.f32.mrf.mxu0
    %v2767 = vadd.f32 %v2726, %v2766
    %v2768 = vpop.f32.mrf.mxu0
    %v2769 = vpop.f32.mrf.mxu0
    %2770 = vdwg.mxu0
    %2771 = vmatprep.subr.bf16.mxu0 0
    %2772 = vmatpush1.bf16.msra.mxu0 0
    %2773 = vmatprep.subr.bf16.mxu0 0
    %2774 = vmatpush1.bf16.msra.mxu0 0
    %2775 = vmatprep.subr.bf16.mxu0 0
    %2776 = vmatpush1.bf16.msra.mxu0 0
    %2777 = vmatprep.subr.bf16.mxu0 0
    %2778 = vmatpush1.bf16.msra.mxu0 0
    %2779 = vmatprep.subr.bf16.mxu0 0
    %2780 = vmatpush1.bf16.msra.mxu0 0
    %2781 = vmatprep.subr.bf16.mxu0 0
    %2782 = vmatpush1.bf16.msra.mxu0 0
    %2783 = vmatprep.subr.bf16.mxu0 0
    %2784 = vmatpush1.bf16.msra.mxu0 0
    %2785 = vmatprep.subr.bf16.mxu0 %v2083
    %2786 = vmatpush1.bf16.msra.mxu0 %v2082
    %2787 = vmatprep.subr.bf16.mxu0 0
    %2788 = vmatpush2.bf16.msra.mxu0 0
    %2789 = vmatprep.subr.bf16.mxu0 0
    %2790 = vmatpush2.bf16.msra.mxu0 0
    %2791 = vmatprep.subr.bf16.mxu0 0
    %2792 = vmatpush2.bf16.msra.mxu0 0
    %2793 = vmatprep.subr.bf16.mxu0 0
    %2794 = vmatpush2.bf16.msra.mxu0 0
    %2795 = vmatprep.subr.bf16.mxu0 0
    %2796 = vmatpush2.bf16.msra.mxu0 0
    %2797 = vmatprep.subr.bf16.mxu0 0
    %2798 = vmatpush2.bf16.msra.mxu0 0
    %2799 = vmatprep.subr.bf16.mxu0 0
    %2800 = vmatpush2.bf16.msra.mxu0 0
    %2801 = vmatprep.subr.bf16.mxu0 0
    %2802 = vmatpush2.bf16.msra.mxu0 0
    %2803 = vmatprep.mubr.bf16.mxu0 0
    %2804 = vmatmul.mubr.bf16.gmra.mxu0 %v2482
    %v2805 = vpop.f32.mrf.mxu0
    %v2806 = vadd.f32 %v2765, %v2805
    %v2807 = vpop.f32.mrf.mxu0
    %v2808 = vadd.f32 %v2767, %v2807
    %v2809 = vpop.f32.mrf.mxu0
    %v2810 = vpop.f32.mrf.mxu0
    %2811 = vdwg.mxu0
    %2812 = vmatprep.subr.bf16.mxu0 %v1757
    %2813 = vmatpush1.bf16.msra.mxu0 %v1756
    %2814 = vmatprep.subr.bf16.mxu0 %v1749
    %2815 = vmatpush1.bf16.msra.mxu0 %v1748
    %2816 = vmatprep.subr.bf16.mxu0 %v1741
    %2817 = vmatpush1.bf16.msra.mxu0 %v1740
    %2818 = vmatprep.subr.bf16.mxu0 %v1733
    %2819 = vmatpush1.bf16.msra.mxu0 %v1732
    %2820 = vmatprep.subr.bf16.mxu0 %v1725
    %2821 = vmatpush1.bf16.msra.mxu0 %v1724
    %2822 = vmatprep.subr.bf16.mxu0 %v1717
    %2823 = vmatpush1.bf16.msra.mxu0 %v1716
    %2824 = vmatprep.subr.bf16.mxu0 %v1709
    %2825 = vmatpush1.bf16.msra.mxu0 %v1708
    %2826 = vmatprep.subr.bf16.mxu0 %v1701
    %2827 = vmatpush1.bf16.msra.mxu0 %v1700
    %2828 = vmatprep.subr.bf16.mxu0 %v1821
    %2829 = vmatpush2.bf16.msra.mxu0 %v1820
    %2830 = vmatprep.subr.bf16.mxu0 %v1813
    %2831 = vmatpush2.bf16.msra.mxu0 %v1812
    %2832 = vmatprep.subr.bf16.mxu0 %v1805
    %2833 = vmatpush2.bf16.msra.mxu0 %v1804
    %2834 = vmatprep.subr.bf16.mxu0 %v1797
    %2835 = vmatpush2.bf16.msra.mxu0 %v1796
    %2836 = vmatprep.subr.bf16.mxu0 %v1789
    %2837 = vmatpush2.bf16.msra.mxu0 %v1788
    %2838 = vmatprep.subr.bf16.mxu0 %v1781
    %2839 = vmatpush2.bf16.msra.mxu0 %v1780
    %2840 = vmatprep.subr.bf16.mxu0 %v1773
    %2841 = vmatpush2.bf16.msra.mxu0 %v1772
    %2842 = vmatprep.subr.bf16.mxu0 %v1765
    %2843 = vmatpush2.bf16.msra.mxu0 %v1764
    %2844 = vmatprep.mubr.bf16.mxu0 %v80
    %2845 = vmatmul.mubr.bf16.gmra.mxu0 %v79
    %v2846 = vpop.f32.mrf.mxu0
    %v2847 = vadd.f32 %v499, %v2846
    %v2848 = vpop.f32.mrf.mxu0
    %v2849 = vadd.f32 %v503, %v2848
    %v2850 = vpop.f32.mrf.mxu0
    %v2851 = vpop.f32.mrf.mxu0
    %2852 = vdwg.mxu0
    %2853 = vmatprep.subr.bf16.mxu0 %v1885
    %2854 = vmatpush1.bf16.msra.mxu0 %v1884
    %2855 = vmatprep.subr.bf16.mxu0 %v1877
    %2856 = vmatpush1.bf16.msra.mxu0 %v1876
    %2857 = vmatprep.subr.bf16.mxu0 %v1869
    %2858 = vmatpush1.bf16.msra.mxu0 %v1868
    %2859 = vmatprep.subr.bf16.mxu0 %v1861
    %2860 = vmatpush1.bf16.msra.mxu0 %v1860
    %2861 = vmatprep.subr.bf16.mxu0 %v1853
    %2862 = vmatpush1.bf16.msra.mxu0 %v1852
    %2863 = vmatprep.subr.bf16.mxu0 %v1845
    %2864 = vmatpush1.bf16.msra.mxu0 %v1844
    %2865 = vmatprep.subr.bf16.mxu0 %v1837
    %2866 = vmatpush1.bf16.msra.mxu0 %v1836
    %2867 = vmatprep.subr.bf16.mxu0 %v1829
    %2868 = vmatpush1.bf16.msra.mxu0 %v1828
    %2869 = vmatprep.subr.bf16.mxu0 %v1949
    %2870 = vmatpush2.bf16.msra.mxu0 %v1948
    %2871 = vmatprep.subr.bf16.mxu0 %v1941
    %2872 = vmatpush2.bf16.msra.mxu0 %v1940
    %2873 = vmatprep.subr.bf16.mxu0 %v1933
    %2874 = vmatpush2.bf16.msra.mxu0 %v1932
    %2875 = vmatprep.subr.bf16.mxu0 %v1925
    %2876 = vmatpush2.bf16.msra.mxu0 %v1924
    %2877 = vmatprep.subr.bf16.mxu0 %v1917
    %2878 = vmatpush2.bf16.msra.mxu0 %v1916
    %2879 = vmatprep.subr.bf16.mxu0 %v1909
    %2880 = vmatpush2.bf16.msra.mxu0 %v1908
    %2881 = vmatprep.subr.bf16.mxu0 %v1901
    %2882 = vmatpush2.bf16.msra.mxu0 %v1900
    %2883 = vmatprep.subr.bf16.mxu0 %v1893
    %2884 = vmatpush2.bf16.msra.mxu0 %v1892
    %2885 = vmatprep.mubr.bf16.mxu0 %v82
    %2886 = vmatmul.mubr.bf16.gmra.mxu0 %v81
    %v2887 = vpop.f32.mrf.mxu0
    %v2888 = vadd.f32 %v2847, %v2887
    %v2889 = vpop.f32.mrf.mxu0
    %v2890 = vadd.f32 %v2849, %v2889
    %v2891 = vpop.f32.mrf.mxu0
    %v2892 = vpop.f32.mrf.mxu0
    %2893 = vdwg.mxu0
    %2894 = vmatprep.subr.bf16.mxu0 %v2013
    %2895 = vmatpush1.bf16.msra.mxu0 %v2012
    %2896 = vmatprep.subr.bf16.mxu0 %v2005
    %2897 = vmatpush1.bf16.msra.mxu0 %v2004
    %2898 = vmatprep.subr.bf16.mxu0 %v1997
    %2899 = vmatpush1.bf16.msra.mxu0 %v1996
    %2900 = vmatprep.subr.bf16.mxu0 %v1989
    %2901 = vmatpush1.bf16.msra.mxu0 %v1988
    %2902 = vmatprep.subr.bf16.mxu0 %v1981
    %2903 = vmatpush1.bf16.msra.mxu0 %v1980
    %2904 = vmatprep.subr.bf16.mxu0 %v1973
    %2905 = vmatpush1.bf16.msra.mxu0 %v1972
    %2906 = vmatprep.subr.bf16.mxu0 %v1965
    %2907 = vmatpush1.bf16.msra.mxu0 %v1964
    %2908 = vmatprep.subr.bf16.mxu0 %v1957
    %2909 = vmatpush1.bf16.msra.mxu0 %v1956
    %2910 = vmatprep.subr.bf16.mxu0 %v2077
    %2911 = vmatpush2.bf16.msra.mxu0 %v2076
    %2912 = vmatprep.subr.bf16.mxu0 %v2069
    %2913 = vmatpush2.bf16.msra.mxu0 %v2068
    %2914 = vmatprep.subr.bf16.mxu0 %v2061
    %2915 = vmatpush2.bf16.msra.mxu0 %v2060
    %2916 = vmatprep.subr.bf16.mxu0 %v2053
    %2917 = vmatpush2.bf16.msra.mxu0 %v2052
    %2918 = vmatprep.subr.bf16.mxu0 %v2045
    %2919 = vmatpush2.bf16.msra.mxu0 %v2044
    %2920 = vmatprep.subr.bf16.mxu0 %v2037
    %2921 = vmatpush2.bf16.msra.mxu0 %v2036
    %2922 = vmatprep.subr.bf16.mxu0 %v2029
    %2923 = vmatpush2.bf16.msra.mxu0 %v2028
    %2924 = vmatprep.subr.bf16.mxu0 %v2021
    %2925 = vmatpush2.bf16.msra.mxu0 %v2020
    %2926 = vmatprep.mubr.bf16.mxu0 %v84
    %2927 = vmatmul.mubr.bf16.gmra.mxu0 %v83
    %v2928 = vpop.f32.mrf.mxu0
    %v2929 = vadd.f32 %v2888, %v2928
    %v2930 = vpop.f32.mrf.mxu0
    %v2931 = vadd.f32 %v2890, %v2930
    %v2932 = vpop.f32.mrf.mxu0
    %v2933 = vpop.f32.mrf.mxu0
    %2934 = vdwg.mxu0
    %2935 = vmatprep.subr.bf16.mxu0 0
    %2936 = vmatpush1.bf16.msra.mxu0 0
    %2937 = vmatprep.subr.bf16.mxu0 0
    %2938 = vmatpush1.bf16.msra.mxu0 0
    %2939 = vmatprep.subr.bf16.mxu0 0
    %2940 = vmatpush1.bf16.msra.mxu0 0
    %2941 = vmatprep.subr.bf16.mxu0 0
    %2942 = vmatpush1.bf16.msra.mxu0 0
    %2943 = vmatprep.subr.bf16.mxu0 0
    %2944 = vmatpush1.bf16.msra.mxu0 0
    %2945 = vmatprep.subr.bf16.mxu0 0
    %2946 = vmatpush1.bf16.msra.mxu0 0
    %2947 = vmatprep.subr.bf16.mxu0 0
    %2948 = vmatpush1.bf16.msra.mxu0 0
    %2949 = vmatprep.subr.bf16.mxu0 %v2085
    %2950 = vmatpush1.bf16.msra.mxu0 %v2084
    %2951 = vmatprep.subr.bf16.mxu0 0
    %2952 = vmatpush2.bf16.msra.mxu0 0
    %2953 = vmatprep.subr.bf16.mxu0 0
    %2954 = vmatpush2.bf16.msra.mxu0 0
    %2955 = vmatprep.subr.bf16.mxu0 0
    %2956 = vmatpush2.bf16.msra.mxu0 0
    %2957 = vmatprep.subr.bf16.mxu0 0
    %2958 = vmatpush2.bf16.msra.mxu0 0
    %2959 = vmatprep.subr.bf16.mxu0 0
    %2960 = vmatpush2.bf16.msra.mxu0 0
    %2961 = vmatprep.subr.bf16.mxu0 0
    %2962 = vmatpush2.bf16.msra.mxu0 0
    %2963 = vmatprep.subr.bf16.mxu0 0
    %2964 = vmatpush2.bf16.msra.mxu0 0
    %2965 = vmatprep.subr.bf16.mxu0 0
    %2966 = vmatpush2.bf16.msra.mxu0 0
    %2967 = vmatprep.mubr.bf16.mxu0 0
    %2968 = vmatmul.mubr.bf16.gmra.mxu0 %v2482
    %v2969 = vpop.f32.mrf.mxu0
    %v2970 = vadd.f32 %v2929, %v2969
    %v2971 = vpop.f32.mrf.mxu0
    %v2972 = vadd.f32 %v2931, %v2971
    %v2973 = vpop.f32.mrf.mxu0
    %v2974 = vpop.f32.mrf.mxu0
    %2975 = vdwg.mxu0
    %2976 = vmatprep.subr.bf16.mxu0 %v1759
    %2977 = vmatpush1.bf16.msra.mxu0 %v1758
    %2978 = vmatprep.subr.bf16.mxu0 %v1751
    %2979 = vmatpush1.bf16.msra.mxu0 %v1750
    %2980 = vmatprep.subr.bf16.mxu0 %v1743
    %2981 = vmatpush1.bf16.msra.mxu0 %v1742
    %2982 = vmatprep.subr.bf16.mxu0 %v1735
    %2983 = vmatpush1.bf16.msra.mxu0 %v1734
    %2984 = vmatprep.subr.bf16.mxu0 %v1727
    %2985 = vmatpush1.bf16.msra.mxu0 %v1726
    %2986 = vmatprep.subr.bf16.mxu0 %v1719
    %2987 = vmatpush1.bf16.msra.mxu0 %v1718
    %2988 = vmatprep.subr.bf16.mxu0 %v1711
    %2989 = vmatpush1.bf16.msra.mxu0 %v1710
    %2990 = vmatprep.subr.bf16.mxu0 %v1703
    %2991 = vmatpush1.bf16.msra.mxu0 %v1702
    %2992 = vmatprep.subr.bf16.mxu0 %v1823
    %2993 = vmatpush2.bf16.msra.mxu0 %v1822
    %2994 = vmatprep.subr.bf16.mxu0 %v1815
    %2995 = vmatpush2.bf16.msra.mxu0 %v1814
    %2996 = vmatprep.subr.bf16.mxu0 %v1807
    %2997 = vmatpush2.bf16.msra.mxu0 %v1806
    %2998 = vmatprep.subr.bf16.mxu0 %v1799
    %2999 = vmatpush2.bf16.msra.mxu0 %v1798
    %3000 = vmatprep.subr.bf16.mxu0 %v1791
    %3001 = vmatpush2.bf16.msra.mxu0 %v1790
    %3002 = vmatprep.subr.bf16.mxu0 %v1783
    %3003 = vmatpush2.bf16.msra.mxu0 %v1782
    %3004 = vmatprep.subr.bf16.mxu0 %v1775
    %3005 = vmatpush2.bf16.msra.mxu0 %v1774
    %3006 = vmatprep.subr.bf16.mxu0 %v1767
    %3007 = vmatpush2.bf16.msra.mxu0 %v1766
    %3008 = vmatprep.mubr.bf16.mxu0 %v80
    %3009 = vmatmul.mubr.bf16.gmra.mxu0 %v79
    %v3010 = vpop.f32.mrf.mxu0
    %v3011 = vadd.f32 %v507, %v3010
    %v3012 = vpop.f32.mrf.mxu0
    %v3013 = vadd.f32 %v511, %v3012
    %v3014 = vpop.f32.mrf.mxu0
    %v3015 = vpop.f32.mrf.mxu0
    %3016 = vdwg.mxu0
    %3017 = vmatprep.subr.bf16.mxu0 %v1887
    %3018 = vmatpush1.bf16.msra.mxu0 %v1886
    %3019 = vmatprep.subr.bf16.mxu0 %v1879
    %3020 = vmatpush1.bf16.msra.mxu0 %v1878
    %3021 = vmatprep.subr.bf16.mxu0 %v1871
    %3022 = vmatpush1.bf16.msra.mxu0 %v1870
    %3023 = vmatprep.subr.bf16.mxu0 %v1863
    %3024 = vmatpush1.bf16.msra.mxu0 %v1862
    %3025 = vmatprep.subr.bf16.mxu0 %v1855
    %3026 = vmatpush1.bf16.msra.mxu0 %v1854
    %3027 = vmatprep.subr.bf16.mxu0 %v1847
    %3028 = vmatpush1.bf16.msra.mxu0 %v1846
    %3029 = vmatprep.subr.bf16.mxu0 %v1839
    %3030 = vmatpush1.bf16.msra.mxu0 %v1838
    %3031 = vmatprep.subr.bf16.mxu0 %v1831
    %3032 = vmatpush1.bf16.msra.mxu0 %v1830
    %3033 = vmatprep.subr.bf16.mxu0 %v1951
    %3034 = vmatpush2.bf16.msra.mxu0 %v1950
    %3035 = vmatprep.subr.bf16.mxu0 %v1943
    %3036 = vmatpush2.bf16.msra.mxu0 %v1942
    %3037 = vmatprep.subr.bf16.mxu0 %v1935
    %3038 = vmatpush2.bf16.msra.mxu0 %v1934
    %3039 = vmatprep.subr.bf16.mxu0 %v1927
    %3040 = vmatpush2.bf16.msra.mxu0 %v1926
    %3041 = vmatprep.subr.bf16.mxu0 %v1919
    %3042 = vmatpush2.bf16.msra.mxu0 %v1918
    %3043 = vmatprep.subr.bf16.mxu0 %v1911
    %3044 = vmatpush2.bf16.msra.mxu0 %v1910
    %3045 = vmatprep.subr.bf16.mxu0 %v1903
    %3046 = vmatpush2.bf16.msra.mxu0 %v1902
    %3047 = vmatprep.subr.bf16.mxu0 %v1895
    %3048 = vmatpush2.bf16.msra.mxu0 %v1894
    %3049 = vmatprep.mubr.bf16.mxu0 %v82
    %3050 = vmatmul.mubr.bf16.gmra.mxu0 %v81
    %v3051 = vpop.f32.mrf.mxu0
    %v3052 = vadd.f32 %v3011, %v3051
    %v3053 = vpop.f32.mrf.mxu0
    %v3054 = vadd.f32 %v3013, %v3053
    %v3055 = vpop.f32.mrf.mxu0
    %v3056 = vpop.f32.mrf.mxu0
    %3057 = vdwg.mxu0
    %3058 = vmatprep.subr.bf16.mxu0 %v2015
    %3059 = vmatpush1.bf16.msra.mxu0 %v2014
    %3060 = vmatprep.subr.bf16.mxu0 %v2007
    %3061 = vmatpush1.bf16.msra.mxu0 %v2006
    %3062 = vmatprep.subr.bf16.mxu0 %v1999
    %3063 = vmatpush1.bf16.msra.mxu0 %v1998
    %3064 = vmatprep.subr.bf16.mxu0 %v1991
    %3065 = vmatpush1.bf16.msra.mxu0 %v1990
    %3066 = vmatprep.subr.bf16.mxu0 %v1983
    %3067 = vmatpush1.bf16.msra.mxu0 %v1982
    %3068 = vmatprep.subr.bf16.mxu0 %v1975
    %3069 = vmatpush1.bf16.msra.mxu0 %v1974
    %3070 = vmatprep.subr.bf16.mxu0 %v1967
    %3071 = vmatpush1.bf16.msra.mxu0 %v1966
    %3072 = vmatprep.subr.bf16.mxu0 %v1959
    %3073 = vmatpush1.bf16.msra.mxu0 %v1958
    %3074 = vmatprep.subr.bf16.mxu0 %v2079
    %3075 = vmatpush2.bf16.msra.mxu0 %v2078
    %3076 = vmatprep.subr.bf16.mxu0 %v2071
    %3077 = vmatpush2.bf16.msra.mxu0 %v2070
    %3078 = vmatprep.subr.bf16.mxu0 %v2063
    %3079 = vmatpush2.bf16.msra.mxu0 %v2062
    %3080 = vmatprep.subr.bf16.mxu0 %v2055
    %3081 = vmatpush2.bf16.msra.mxu0 %v2054
    %3082 = vmatprep.subr.bf16.mxu0 %v2047
    %3083 = vmatpush2.bf16.msra.mxu0 %v2046
    %3084 = vmatprep.subr.bf16.mxu0 %v2039
    %3085 = vmatpush2.bf16.msra.mxu0 %v2038
    %3086 = vmatprep.subr.bf16.mxu0 %v2031
    %3087 = vmatpush2.bf16.msra.mxu0 %v2030
    %3088 = vmatprep.subr.bf16.mxu0 %v2023
    %3089 = vmatpush2.bf16.msra.mxu0 %v2022
    %3090 = vmatprep.mubr.bf16.mxu0 %v84
    %3091 = vmatmul.mubr.bf16.gmra.mxu0 %v83
    %v3092 = vpop.f32.mrf.mxu0
    %v3093 = vadd.f32 %v3052, %v3092
    %v3094 = vpop.f32.mrf.mxu0
    %v3095 = vadd.f32 %v3054, %v3094
    %v3096 = vpop.f32.mrf.mxu0
    %v3097 = vpop.f32.mrf.mxu0
    %3098 = vdwg.mxu0
    %3099 = vmatprep.subr.bf16.mxu0 0
    %3100 = vmatpush1.bf16.msra.mxu0 0
    %3101 = vmatprep.subr.bf16.mxu0 0
    %3102 = vmatpush1.bf16.msra.mxu0 0
    %3103 = vmatprep.subr.bf16.mxu0 0
    %3104 = vmatpush1.bf16.msra.mxu0 0
    %3105 = vmatprep.subr.bf16.mxu0 0
    %3106 = vmatpush1.bf16.msra.mxu0 0
    %3107 = vmatprep.subr.bf16.mxu0 0
    %3108 = vmatpush1.bf16.msra.mxu0 0
    %3109 = vmatprep.subr.bf16.mxu0 0
    %3110 = vmatpush1.bf16.msra.mxu0 0
    %3111 = vmatprep.subr.bf16.mxu0 0
    %3112 = vmatpush1.bf16.msra.mxu0 0
    %3113 = vmatprep.subr.bf16.mxu0 %v2087
    %3114 = vmatpush1.bf16.msra.mxu0 %v2086
    %3115 = vmatprep.subr.bf16.mxu0 0
    %3116 = vmatpush2.bf16.msra.mxu0 0
    %3117 = vmatprep.subr.bf16.mxu0 0
    %3118 = vmatpush2.bf16.msra.mxu0 0
    %3119 = vmatprep.subr.bf16.mxu0 0
    %3120 = vmatpush2.bf16.msra.mxu0 0
    %3121 = vmatprep.subr.bf16.mxu0 0
    %3122 = vmatpush2.bf16.msra.mxu0 0
    %3123 = vmatprep.subr.bf16.mxu0 0
    %3124 = vmatpush2.bf16.msra.mxu0 0
    %3125 = vmatprep.subr.bf16.mxu0 0
    %3126 = vmatpush2.bf16.msra.mxu0 0
    %3127 = vmatprep.subr.bf16.mxu0 0
    %3128 = vmatpush2.bf16.msra.mxu0 0
    %3129 = vmatprep.subr.bf16.mxu0 0
    %3130 = vmatpush2.bf16.msra.mxu0 0
    %3131 = vmatprep.mubr.bf16.mxu0 0
    %3132 = vmatmul.mubr.bf16.gmra.mxu0 %v2482
    %v3133 = vpop.f32.mrf.mxu0
    %v3134 = vadd.f32 %v3093, %v3133
    %v3135 = vpop.f32.mrf.mxu0
    %v3136 = vadd.f32 %v3095, %v3135
    %v3137 = vpop.f32.mrf.mxu0
    %v3138 = vpop.f32.mrf.mxu0
    %3139 = vdwg.mxu0
    %v3140 = vmul.f32 %v2642, 0.2
    %v3141 = vmul.f32 %v2644, 0.2
    %v3142 = vmul.f32 %v2806, 0.2
    %v3143 = vmul.f32 %v2808, 0.2
    %v3144 = vmul.f32 %v2970, 0.2
    %v3145 = vmul.f32 %v2972, 0.2
    %v3146 = vmul.f32 %v3134, 0.2
    %v3147 = vmul.f32 %v3136, 0.2
    %v3148 = vmax.f32 %v2642, %v3140
    %v3149 = vmax.f32 %v2644, %v3141
    %v3150 = vmax.f32 %v2806, %v3142
    %v3151 = vmax.f32 %v2808, %v3143
    %v3152 = vmax.f32 %v2970, %v3144
    %v3153 = vmax.f32 %v2972, %v3145
    %v3154 = vmax.f32 %v3134, %v3146
    %v3155 = vmax.f32 %v3136, %v3147
    %v3156 = vld [vmem:[#allocation9] sm:$0xff]
    %v3158 = vlaneseq
    %v3159 = vshrl.u32 %v3158, 7
    %v3160 = vsub.s32 0, %v3159
    %v3161 = vrot.slane %v3156, %v3160
    %v3162 = vlaneseq
    %v3163 = vshrl.u32 %v3162, 7
    %v3164 = vsub.s32 1, %v3163
    %v3165 = vrot.slane %v3156, %v3164
    %v3166 = vlaneseq
    %v3167 = vshrl.u32 %v3166, 7
    %v3168 = vsub.s32 2, %v3167
    %v3169 = vrot.slane %v3156, %v3168
    %v3170 = vlaneseq
    %v3171 = vshrl.u32 %v3170, 7
    %v3172 = vsub.s32 3, %v3171
    %v3173 = vrot.slane %v3156, %v3172
    %v3174 = vlaneseq
    %v3175 = vshrl.u32 %v3174, 7
    %v3176 = vsub.s32 4, %v3175
    %v3177 = vrot.slane %v3156, %v3176
    %v3178 = vlaneseq
    %v3179 = vshrl.u32 %v3178, 7
    %v3180 = vsub.s32 5, %v3179
    %v3181 = vrot.slane %v3156, %v3180
    %v3182 = vlaneseq
    %v3183 = vshrl.u32 %v3182, 7
    %v3184 = vsub.s32 6, %v3183
    %v3185 = vrot.slane %v3156, %v3184
    %v3186 = vlaneseq
    %v3187 = vshrl.u32 %v3186, 7
    %v3188 = vsub.s32 7, %v3187
    %v3189 = vrot.slane %v3156, %v3188
    %v3198 = vmul.f32 %v3148, %v3161
    %v3199 = vmul.f32 %v3149, %v3165
    %v3200 = vmul.f32 %v3150, %v3169
    %v3201 = vmul.f32 %v3151, %v3173
    %v3202 = vmul.f32 %v3152, %v3177
    %v3203 = vmul.f32 %v3153, %v3181
    %v3204 = vmul.f32 %v3154, %v3185
    %v3205 = vmul.f32 %v3155, %v3189
    %v3206 = vadd.f32 %v3198, %v3199
    %v3207 = vadd.f32 %v3206, %v3200
    %v3208 = vadd.f32 %v3207, %v3201
    %v3209 = vadd.f32 %v3208, %v3202
    %v3210 = vadd.f32 %v3209, %v3203
    %v3211 = vadd.f32 %v3210, %v3204
    %v3212 = vadd.f32 %v3211, %v3205
    %3213 = vadd.xlane.f32.xlu0 %v3212
    %v3214 = vpop.xlane.xlu0 %3213
    %3215 = vxpose.xlu0.b32.start [1/16] %v3214, 128
    %3216 = vxpose.xlu0.b32.cont [2/16] 0.0, 128
    %3217 = vxpose.xlu0.b32.cont [3/16] 0.0, 128
    %3218 = vxpose.xlu0.b32.cont [4/16] 0.0, 128
    %3219 = vxpose.xlu0.b32.cont [5/16] 0.0, 128
    %3220 = vxpose.xlu0.b32.cont [6/16] 0.0, 128
    %3221 = vxpose.xlu0.b32.cont [7/16] 0.0, 128
    %3222 = vxpose.xlu0.b32.cont [8/16] 0.0, 128
    %3223 = vxpose.xlu0.b32.cont [9/16] 0.0, 128
    %3224 = vxpose.xlu0.b32.cont [10/16] 0.0, 128
    %3225 = vxpose.xlu0.b32.cont [11/16] 0.0, 128
    %3226 = vxpose.xlu0.b32.cont [12/16] 0.0, 128
    %3227 = vxpose.xlu0.b32.cont [13/16] 0.0, 128
    %3228 = vxpose.xlu0.b32.cont [14/16] 0.0, 128
    %3229 = vxpose.xlu0.b32.cont [15/16] 0.0, 128
    %3230 = vxpose.xlu0.b32.end [16/16] 0.0, 128
    %v3231 = vpop.trf.xlu0
    %v3232 = vpop.trf.xlu0
    %v3233 = vpop.trf.xlu0
    %v3234 = vpop.trf.xlu0
    %v3235 = vpop.trf.xlu0
    %v3236 = vpop.trf.xlu0
    %v3237 = vpop.trf.xlu0
    %v3238 = vpop.trf.xlu0
    %v3239 = vpop.trf.xlu0
    %v3240 = vpop.trf.xlu0
    %v3241 = vpop.trf.xlu0
    %v3242 = vpop.trf.xlu0
    %v3243 = vpop.trf.xlu0
    %v3244 = vpop.trf.xlu0
    %v3245 = vpop.trf.xlu0
    %v3246 = vpop.trf.xlu0
    %s3247 = sld [smem:[#allocation2]]
    %v3248 = vstv %s3247
    %v3249 = vadd.f32 %v3231, %v3248
    %v3250 = vand.u32 2147483647, %v3249
    %v3251 = vsub.f32 0.0, %v3250
    %v3252 = vmul.f32 %v3251, 1.442695
    %v3253 = vpow.pop %v3252
    %vm3254 = vcmp.ge.f32.partialorder %v3249, 0.0
    %v3255 = vadd.f32 %v3253, 1.0
    %v3256 = vrcp.pop %v3255
    %v3257 = vmul.f32 1.0, %v3256
    %v3258 = vmul.f32 %v3253, %v3256
    %v3259 = vsel %vm3254, %v3257, %v3258
    %vm3260 = vcmask 57344
    %3261 = vst.msk [vmem:[#allocation11] sm:$0x1] %vm3260, %v3259
    // Predicated region
    $region38: #{tpu_custom_call.1} parent=1 // pred_check
      _
    $region39: #{tpu_custom_call.1} parent=1 // pred_check_branch
      %3263 = sbr.rel (0) target = $region41
    $region40: #{tpu_custom_call.1} parent=1 // pred_region
      %s3265 = ssub.s32 16, 16
      %3266 = vsyncadd [#allocation5], %s3265
      %s3268 = sshll.u32 [#allocation11], 4
      %s3269 = int_to_ptr.vmem [resolvable:$true] %s3268
      %3271 = dma.vmem_to_hbm [thread:$0]  %s3269, 16, %s5, [#allocation5]
    $region41: #{tpu_custom_call.1} parent=1 // pred_fallthru
      _
    // Predicated region
    $region42: #{tpu_custom_call.1} parent=1 // pred_check
      _
    $region43: #{tpu_custom_call.1} parent=1 // pred_check_branch
      %3273 = sbr.rel (0) target = $region45
    $region44: #{tpu_custom_call.1} parent=1 // pred_region
      %3274 = dma.done [#allocation5], 16
    $region45: #{tpu_custom_call.1} parent=1 // pred_fallthru
      _
    %3275 = vsyncpa [#allocation4], 1
    %3276 = vsyncpa [#allocation7], 1
    %3277 = vsyncpa [#allocation10], 1
    %3278 = vsyncpa [#allocation5], 1

</llo_original>
